<compile_context>
chip_gen: v7x
topology: tpu7x:2x2x1
jax: 0.10.0
libtpu: 0.0.40
codegen_flags: <defaults>
</compile_context>

<pallas_src>
import math
from functools import partial

import jax
import jax.numpy as jnp
from jax.experimental import pallas as pl
from jax.experimental.pallas import tpu as pltpu

TM = 128                 # node row tile
TK = 128                 # adjacency reduction tile
HP = 128                 # padded hidden width (lane-dense)
GP = 8                   # padded graph count (sublane-dense pooled block)
FUSE_MAX_NODES = 2048    # below this, run the whole net as one fused kernel
VMEM_LIMIT = 32 * 1024 * 1024


# ---------------------------------------------------------------------------
# Fused single-program kernel (small graphs: adjacency resident in VMEM)
# ---------------------------------------------------------------------------
def fused_kernel(adj_ref, x_ref, w1_ref, b1_ref, w2_ref, b2_ref,
                 pool_ref, wm1_ref, bm1_ref, wm2_ref, bm2_ref, out_ref):
    adj = adj_ref[...]
    # Layer 1: relu(A @ (X @ W1) + b1)   (A(XW) == (AX)W; XW-first is MXU-cheap)
    xw1 = jnp.dot(x_ref[...], w1_ref[...],
                  preferred_element_type=jnp.float32).astype(jnp.bfloat16)
    h1 = jnp.maximum(
        jnp.dot(adj, xw1, preferred_element_type=jnp.float32) + b1_ref[...],
        0.0).astype(jnp.bfloat16)
    # Layer 2 (dropout = identity in eval)
    h1w2 = jnp.dot(h1, w2_ref[...],
                   preferred_element_type=jnp.float32).astype(jnp.bfloat16)
    h2 = jnp.maximum(
        jnp.dot(adj, h1w2, preferred_element_type=jnp.float32) + b2_ref[...],
        0.0).astype(jnp.bfloat16)
    # global_mean_pool + MLP (head weights padded to 128 output lanes)
    g = jnp.dot(pool_ref[...], h2, preferred_element_type=jnp.float32)
    m = jnp.maximum(
        jnp.dot(g.astype(jnp.bfloat16), wm1_ref[...],
                preferred_element_type=jnp.float32) + bm1_ref[...],
        0.0).astype(jnp.bfloat16)
    out_ref[...] = jnp.dot(m, wm2_ref[...],
                           preferred_element_type=jnp.float32) + bm2_ref[...]


def fused_forward(adj, x, w1, b1, w2, b2, pool, wm1, bm1, wm2, bm2):
    vmem = pl.BlockSpec(memory_space=pltpu.MemorySpace.VMEM)
    return pl.pallas_call(
        fused_kernel,
        out_shape=jax.ShapeDtypeStruct((pool.shape[0], HP), jnp.float32),
        in_specs=[vmem] * 11,
        out_specs=vmem,
        compiler_params=pltpu.CompilerParams(vmem_limit_bytes=VMEM_LIMIT),
    )(adj, x, w1, b1, w2, b2, pool, wm1, bm1, wm2, bm2)


# ---------------------------------------------------------------------------
# Tiled kernels (large graphs)
# ---------------------------------------------------------------------------
def feat_transform_kernel(x_ref, w_ref, out_ref):
    """out[i] = X[i] @ W  (hoisted per-layer feature transform, bf16 MXU)."""
    out_ref[...] = jnp.dot(x_ref[...], w_ref[...],
                           preferred_element_type=jnp.float32).astype(out_ref.dtype)


def feat_transform(x, w):
    n = x.shape[0]
    return pl.pallas_call(
        feat_transform_kernel,
        out_shape=jax.ShapeDtypeStruct((n, HP), jnp.bfloat16),
        grid_spec=pltpu.PrefetchScalarGridSpec(
            num_scalar_prefetch=0,
            grid=(n // TM,),
            in_specs=[
                pl.BlockSpec((TM, HP), lambda i: (i, 0)),
                pl.BlockSpec((HP, HP), lambda i: (0, 0)),   # W resident
            ],
            out_specs=pl.BlockSpec((TM, HP), lambda i: (i, 0)),
        ),
        compiler_params=pltpu.CompilerParams(
            dimension_semantics=("parallel",),
            vmem_limit_bytes=VMEM_LIMIT),
    )(x, w)


def gcn_agg_kernel(adj_ref, xw_ref, b_ref, out_ref, acc_ref):
    """out[i] = relu(sum_k A[i,k] @ XW[k] + b). XW is VMEM-resident; only the
    bf16 adjacency is streamed from HBM."""
    k = pl.program_id(1)

    @pl.when(k == 0)
    def _():
        acc_ref[...] = jnp.zeros_like(acc_ref)

    off = pl.multiple_of(k * TK, TK)
    acc_ref[...] += jnp.dot(adj_ref[...], xw_ref[pl.ds(off, TK), :],
                            preferred_element_type=jnp.float32)

    @pl.when(k == pl.num_programs(1) - 1)
    def _():
        out_ref[...] = jnp.maximum(acc_ref[...] + b_ref[...],
                                   0.0).astype(out_ref.dtype)


def gcn_agg(adj, xw, b):
    n = adj.shape[0]
    return pl.pallas_call(
        gcn_agg_kernel,
        out_shape=jax.ShapeDtypeStruct((n, HP), jnp.bfloat16),
        grid_spec=pltpu.PrefetchScalarGridSpec(
            num_scalar_prefetch=0,
            grid=(n // TM, n // TK),
            in_specs=[
                pl.BlockSpec((TM, TK), lambda i, k: (i, k)),   # adjacency (streamed)
                pl.BlockSpec((n, HP), lambda i, k: (0, 0)),    # features (resident)
                pl.BlockSpec((1, HP), lambda i, k: (0, 0)),    # bias (resident)
            ],
            out_specs=pl.BlockSpec((TM, HP), lambda i, k: (i, 0)),
            scratch_shapes=[pltpu.VMEM((TM, HP), jnp.float32)],
        ),
        compiler_params=pltpu.CompilerParams(
            dimension_semantics=("parallel", "arbitrary"),
            vmem_limit_bytes=VMEM_LIMIT),
    )(adj, xw, b)


def pool_mlp_kernel(pool_ref, h_ref, wm1_ref, bm1_ref, wm2_ref, bm2_ref,
                    out_ref, acc_ref):
    """Tiled global_mean_pool over the node axis + MLP epilogue at k==last."""
    k = pl.program_id(0)

    @pl.when(k == 0)
    def _():
        acc_ref[...] = jnp.zeros_like(acc_ref)

    acc_ref[...] += jnp.dot(pool_ref[...], h_ref[...],
                            preferred_element_type=jnp.float32)

    @pl.when(k == pl.num_programs(0) - 1)
    def _():
        m = jnp.maximum(
            jnp.dot(acc_ref[...].astype(jnp.bfloat16), wm1_ref[...],
                    preferred_element_type=jnp.float32) + bm1_ref[...],
            0.0).astype(jnp.bfloat16)
        out_ref[...] = jnp.dot(m, wm2_ref[...],
                               preferred_element_type=jnp.float32) + bm2_ref[...]


def pool_mlp(pool, h, wm1, bm1, wm2, bm2):
    gp, n = pool.shape
    return pl.pallas_call(
        pool_mlp_kernel,
        out_shape=jax.ShapeDtypeStruct((gp, HP), jnp.float32),
        grid_spec=pltpu.PrefetchScalarGridSpec(
            num_scalar_prefetch=0,
            grid=(n // TK,),
            in_specs=[
                pl.BlockSpec((gp, TK), lambda k: (0, k)),
                pl.BlockSpec((TK, HP), lambda k: (k, 0)),
                pl.BlockSpec((HP, HP), lambda k: (0, 0)),
                pl.BlockSpec((1, HP), lambda k: (0, 0)),
                pl.BlockSpec((HP, HP), lambda k: (0, 0)),
                pl.BlockSpec((1, HP), lambda k: (0, 0)),
            ],
            out_specs=pl.BlockSpec((gp, HP), lambda k: (0, 0)),
            scratch_shapes=[pltpu.VMEM((gp, HP), jnp.float32)],
        ),
        compiler_params=pltpu.CompilerParams(
            dimension_semantics=("arbitrary",),
            vmem_limit_bytes=VMEM_LIMIT),
    )(pool, h, wm1, bm1, wm2, bm2)


# ---------------------------------------------------------------------------
# Plain-JAX glue (graph densification, padding, embedding lookup)
# ---------------------------------------------------------------------------
def round_up(x, m):
    return ((x + m - 1) // m) * m


def pad2(a, rows, cols):
    return jnp.pad(a, ((0, rows - a.shape[0]), (0, cols - a.shape[1])))


def build_gcn_adjacency(edge_index, edge_weight, num_nodes, n_pad):
    """D^-1/2 (A + I) D^-1/2 scattered directly into the padded (n_pad, n_pad)
    buffer and cast to bf16 (single O(N^2) wrapper write; scatter+cast fuse)."""
    row, col = edge_index[0], edge_index[1]
    self_idx = jnp.arange(num_nodes, dtype=row.dtype)
    row = jnp.concatenate([row, self_idx])
    col = jnp.concatenate([col, self_idx])
    w = jnp.concatenate([edge_weight, jnp.ones((num_nodes,), jnp.float32)])
    deg = jnp.zeros((num_nodes,), jnp.float32).at[col].add(w)
    dinv = jnp.where(deg > 0, 1.0 / jnp.sqrt(deg), 0.0)
    norm = dinv[row] * w * dinv[col]
    # messages flow source(row) -> target(col); aggregate at target rows.
    adj = jnp.zeros((n_pad, n_pad), jnp.float32).at[col, row].add(norm)
    return adj.astype(jnp.bfloat16)


def build_pool_matrix(batch, n_pad, g_pad):
    """Mean-pool matrix P [g_pad, n_pad]: P[g, n] = (batch[n]==g) / |graph g|."""
    n = batch.shape[0]
    batch_pad = jnp.concatenate([batch, jnp.full((n_pad - n,), -1, batch.dtype)])
    onehot = (batch_pad[None, :] == jnp.arange(g_pad)[:, None]).astype(jnp.float32)
    counts = jnp.maximum(onehot.sum(axis=1, keepdims=True), 1.0)
    return (onehot / counts).astype(jnp.bfloat16)


@partial(jax.jit, static_argnames=("num_graphs", "force_tiled"))
def sealgnn_pallas(node_labels, edge_index, edge_weight, batch, num_graphs,
                   params, force_tiled=False):
    n = node_labels.shape[0]
    n_pad = round_up(n, math.lcm(TM, TK))
    g_pad = round_up(max(num_graphs, GP), GP)

    # Embedding lookup; zero-pad nodes -> n_pad, hidden 32 -> 128 (lane-dense).
    x = pad2(jnp.take(params["emb"], node_labels, axis=0),
             n_pad, HP).astype(jnp.bfloat16)

    adj = build_gcn_adjacency(edge_index, edge_weight, n, n_pad)   # bf16 [n_pad,n_pad]
    pool = build_pool_matrix(batch, n_pad, g_pad)                  # bf16 [g_pad,n_pad]

    # Zero-padded parameters. Padded hidden *lanes* stay exactly zero; padded
    # node *rows* become relu(b) when biases are nonzero but are killed by the
    # zero adjacency / pool columns, so the real outputs are unaffected.
    w1 = pad2(params["w1"], HP, HP).astype(jnp.bfloat16)
    w2 = pad2(params["w2"], HP, HP).astype(jnp.bfloat16)
    wm1 = pad2(params["wm1"], HP, HP).astype(jnp.bfloat16)
    wm2 = pad2(params["wm2"], HP, HP).astype(jnp.bfloat16)   # head padded to 128 lanes
    b1 = pad2(params["b1"], 1, HP)
    b2 = pad2(params["b2"], 1, HP)
    bm1 = pad2(params["bm1"], 1, HP)
    bm2 = pad2(params["bm2"], 1, HP)

    if (not force_tiled) and n_pad <= FUSE_MAX_NODES:
        out = fused_forward(adj, x, w1, b1, w2, b2, pool, wm1, bm1, wm2, bm2)
    else:
        xw1 = feat_transform(x, w1)        # X @ W1 (hoisted, bf16)
        h1 = gcn_agg(adj, xw1, b1)         # GCNConv1 + ReLU (dropout = id, eval)
        h1w2 = feat_transform(h1, w2)      # H1 @ W2 (hoisted, bf16)
        h2 = gcn_agg(adj, h1w2, b2)        # GCNConv2 + ReLU (dropout = id, eval)
        out = pool_mlp(pool, h2, wm1, bm1, wm2, bm2)
    return out[:num_graphs, 0]             # real logit lives in lane 0


def sealgnn_reference(node_labels, edge_index, edge_weight, batch, num_graphs, params):
    """Pure-JAX f32, unpadded reference for correctness checking."""
    x = jnp.take(params["emb"], node_labels, axis=0)
    n = x.shape[0]
    row, col = edge_index[0], edge_index[1]
    self_idx = jnp.arange(n, dtype=row.dtype)
    row = jnp.concatenate([row, self_idx])
    col = jnp.concatenate([col, self_idx])
    w = jnp.concatenate([edge_weight, jnp.ones((n,), jnp.float32)])
    deg = jnp.zeros((n,), jnp.float32).at[col].add(w)
    dinv = jnp.where(deg > 0, 1.0 / jnp.sqrt(deg), 0.0)
    adj = jnp.zeros((n, n), jnp.float32).at[col, row].add(dinv[row] * w * dinv[col])
    h = jnp.maximum(adj @ (x @ params["w1"]) + params["b1"], 0.0)
    h = jnp.maximum(adj @ (h @ params["w2"]) + params["b2"], 0.0)
    onehot = (batch[None, :] == jnp.arange(num_graphs)[:, None]).astype(jnp.float32)
    pool = onehot / jnp.maximum(onehot.sum(axis=1, keepdims=True), 1.0)
    g = pool @ h
    m = jnp.maximum(g @ params["wm1"] + params["bm1"], 0.0)
    return (m @ params["wm2"] + params["bm2"])[:, 0]


def init_params(key, num_labels, hidden_dim):
    ks = jax.random.split(key, 9)
    s, sb = 0.1, 0.05
    return {
        "emb": s * jax.random.normal(ks[0], (num_labels, hidden_dim), jnp.float32),
        "w1":  s * jax.random.normal(ks[1], (hidden_dim, hidden_dim), jnp.float32),
        "b1":  sb * jax.random.normal(ks[2], (1, hidden_dim), jnp.float32),
        "w2":  s * jax.random.normal(ks[3], (hidden_dim, hidden_dim), jnp.float32),
        "b2":  sb * jax.random.normal(ks[4], (1, hidden_dim), jnp.float32),
        "wm1": s * jax.random.normal(ks[5], (hidden_dim, hidden_dim), jnp.float32),
        "bm1": sb * jax.random.normal(ks[6], (1, hidden_dim), jnp.float32),
        "wm2": s * jax.random.normal(ks[7], (hidden_dim, 1), jnp.float32),
        "bm2": sb * jax.random.normal(ks[8], (1, 1), jnp.float32),
    }


if __name__ == "__main__":
    key = jax.random.PRNGKey(0)
    num_labels = 8
    hidden_dim = 32
    num_graphs = 2
    nodes_per_graph = 72          # 144 nodes -> padded to 256 -> real 2x2 tile grid
    num_nodes = num_graphs * nodes_per_graph
    num_edges = 256

    k_params, k_x, k_g, k_src, k_dst, k_w = jax.random.split(key, 6)
    params = init_params(k_params, num_labels, hidden_dim)

    # data.x : node label indices
    node_labels = jax.random.randint(k_x, (num_nodes,), 0, num_labels, jnp.int32)

    # random edges kept within each graph (block-diagonal structure)
    graph_of_edge = jax.random.randint(k_g, (num_edges,), 0, num_graphs, jnp.int32)
    src_local = jax.random.randint(k_src, (num_edges,), 0, nodes_per_graph, jnp.int32)
    dst_local = jax.random.randint(k_dst, (num_edges,), 0, nodes_per_graph, jnp.int32)
    src = graph_of_edge * nodes_per_graph + src_local
    dst = graph_of_edge * nodes_per_graph + dst_local
    edge_index = jnp.stack([src, dst], axis=0)                      # [2, E]
    edge_weight = jax.random.uniform(k_w, (num_edges,), jnp.float32, 0.1, 1.0)

    batch = jnp.repeat(jnp.arange(num_graphs, dtype=jnp.int32), nodes_per_graph)

    ref = sealgnn_reference(node_labels, edge_index, edge_weight, batch,
                            num_graphs, params)

    # Small-graph path: whole network fused into one pallas_call.
    out_fused = jax.block_until_ready(
        sealgnn_pallas(node_labels, edge_index, edge_weight, batch,
                       num_graphs=num_graphs, params=params))
    assert out_fused.shape == (num_graphs,)
    assert jnp.allclose(out_fused, ref, atol=2e-3, rtol=5e-2), (out_fused, ref)

    # Large-graph path: tiled kernels (hoisted XW, resident features,
    # streamed adjacency, tiled pool+MLP).
    out_tiled = jax.block_until_ready(
        sealgnn_pallas(node_labels, edge_index, edge_weight, batch,
                       num_graphs=num_graphs, params=params, force_tiled=True))
    assert out_tiled.shape == (num_graphs,)
    assert jnp.allclose(out_tiled, ref, atol=2e-3, rtol=5e-2), (out_tiled, ref)

    print("KERNEL_OK")
</pallas_src>

<mosaic_0001>
module attributes {stable_mosaic.version = 11 : i64} {
  func.func private @main(%arg0: i32) attributes {dimension_semantics = [#tpu.dimension_semantics<core_parallel>], iteration_bounds = array<i64: 2>, tpu.core_type = #tpu.core_type<sc_scalar_subcore>, window_params = []} {
    return
  }
}

module attributes {stable_mosaic.version = 11 : i64} {
  func.func private @main(%arg0: i32) attributes {dimension_semantics = [#tpu.dimension_semantics<core_parallel>], iteration_bounds = array<i64: 2>, tpu.core_type = #tpu.core_type<sc_scalar_subcore>, window_params = []} {
    return
  }
}

module attributes {stable_mosaic.version = 11 : i64} {
  func.func @fused_kernel(%arg0: memref<256x256xbf16, #tpu.memory_space<vmem>>, %arg1: memref<256x128xbf16, #tpu.memory_space<vmem>>, %arg2: memref<128x128xbf16, #tpu.memory_space<vmem>>, %arg3: memref<1x128xf32, #tpu.memory_space<vmem>>, %arg4: memref<128x128xbf16, #tpu.memory_space<vmem>>, %arg5: memref<1x128xf32, #tpu.memory_space<vmem>>, %arg6: memref<8x256xbf16, #tpu.memory_space<vmem>>, %arg7: memref<128x128xbf16, #tpu.memory_space<vmem>>, %arg8: memref<1x128xf32, #tpu.memory_space<vmem>>, %arg9: memref<128x128xbf16, #tpu.memory_space<vmem>>, %arg10: memref<1x128xf32, #tpu.memory_space<vmem>>, %arg11: memref<8x128xf32, #tpu.memory_space<vmem>>) attributes {dimension_semantics = [], scalar_prefetch = 0 : i64, scratch_operands = 0 : i64, tpu.core_type = #tpu.core_type<tc>} {
    %c0 = arith.constant 0 : index
    %c0_0 = arith.constant 0 : index
    %0 = vector.load %arg0[%c0, %c0_0] : memref<256x256xbf16, #tpu.memory_space<vmem>>, vector<256x256xbf16>
    %c0_1 = arith.constant 0 : index
    %c0_2 = arith.constant 0 : index
    %1 = vector.load %arg1[%c0_1, %c0_2] : memref<256x128xbf16, #tpu.memory_space<vmem>>, vector<256x128xbf16>
    %c0_3 = arith.constant 0 : index
    %c0_4 = arith.constant 0 : index
    %2 = vector.load %arg2[%c0_3, %c0_4] : memref<128x128xbf16, #tpu.memory_space<vmem>>, vector<128x128xbf16>
    %cst = arith.constant dense<0.000000e+00> : vector<256x128xf32>
    %3 = tpu.matmul %1, %2, %cst {dimension_numbers = #tpu.dot_dimension_numbers<[1], [0], [0], [1], [0, 0, 1, 1], [], []>} : vector<256x128xbf16>, vector<128x128xbf16>, vector<256x128xf32> -> vector<256x128xf32>
    %4 = arith.truncf %3 : vector<256x128xf32> to vector<256x128xbf16>
    %cst_5 = arith.constant dense<0.000000e+00> : vector<256x128xf32>
    %5 = tpu.matmul %0, %4, %cst_5 {dimension_numbers = #tpu.dot_dimension_numbers<[1], [0], [0], [1], [0, 0, 1, 1], [], []>} : vector<256x256xbf16>, vector<256x128xbf16>, vector<256x128xf32> -> vector<256x128xf32>
    %c0_6 = arith.constant 0 : index
    %c0_7 = arith.constant 0 : index
    %6 = vector.load %arg3[%c0_6, %c0_7] : memref<1x128xf32, #tpu.memory_space<vmem>>, vector<1x128xf32>
    %7 = vector.broadcast %6 : vector<1x128xf32> to vector<256x128xf32>
    %8 = arith.addf %5, %7 : vector<256x128xf32>
    %cst_8 = arith.constant 0.000000e+00 : f32
    %9 = vector.broadcast %cst_8 : f32 to vector<256x128xf32>
    %10 = arith.maximumf %8, %9 : vector<256x128xf32>
    %11 = arith.truncf %10 : vector<256x128xf32> to vector<256x128xbf16>
    %c0_9 = arith.constant 0 : index
    %c0_10 = arith.constant 0 : index
    %12 = vector.load %arg4[%c0_9, %c0_10] : memref<128x128xbf16, #tpu.memory_space<vmem>>, vector<128x128xbf16>
    %cst_11 = arith.constant dense<0.000000e+00> : vector<256x128xf32>
    %13 = tpu.matmul %11, %12, %cst_11 {dimension_numbers = #tpu.dot_dimension_numbers<[1], [0], [0], [1], [0, 0, 1, 1], [], []>} : vector<256x128xbf16>, vector<128x128xbf16>, vector<256x128xf32> -> vector<256x128xf32>
    %14 = arith.truncf %13 : vector<256x128xf32> to vector<256x128xbf16>
    %cst_12 = arith.constant dense<0.000000e+00> : vector<256x128xf32>
    %15 = tpu.matmul %0, %14, %cst_12 {dimension_numbers = #tpu.dot_dimension_numbers<[1], [0], [0], [1], [0, 0, 1, 1], [], []>} : vector<256x256xbf16>, vector<256x128xbf16>, vector<256x128xf32> -> vector<256x128xf32>
    %c0_13 = arith.constant 0 : index
    %c0_14 = arith.constant 0 : index
    %16 = vector.load %arg5[%c0_13, %c0_14] : memref<1x128xf32, #tpu.memory_space<vmem>>, vector<1x128xf32>
    %17 = vector.broadcast %16 : vector<1x128xf32> to vector<256x128xf32>
    %18 = arith.addf %15, %17 : vector<256x128xf32>
    %cst_15 = arith.constant 0.000000e+00 : f32
    %19 = vector.broadcast %cst_15 : f32 to vector<256x128xf32>
    %20 = arith.maximumf %18, %19 : vector<256x128xf32>
    %21 = arith.truncf %20 : vector<256x128xf32> to vector<256x128xbf16>
    %c0_16 = arith.constant 0 : index
    %c0_17 = arith.constant 0 : index
    %22 = vector.load %arg6[%c0_16, %c0_17] : memref<8x256xbf16, #tpu.memory_space<vmem>>, vector<8x256xbf16>
    %cst_18 = arith.constant dense<0.000000e+00> : vector<8x128xf32>
    %23 = tpu.matmul %22, %21, %cst_18 {dimension_numbers = #tpu.dot_dimension_numbers<[1], [0], [0], [1], [0, 0, 1, 1], [], []>} : vector<8x256xbf16>, vector<256x128xbf16>, vector<8x128xf32> -> vector<8x128xf32>
    %24 = arith.truncf %23 : vector<8x128xf32> to vector<8x128xbf16>
    %c0_19 = arith.constant 0 : index
    %c0_20 = arith.constant 0 : index
    %25 = vector.load %arg7[%c0_19, %c0_20] : memref<128x128xbf16, #tpu.memory_space<vmem>>, vector<128x128xbf16>
    %cst_21 = arith.constant dense<0.000000e+00> : vector<8x128xf32>
    %26 = tpu.matmul %24, %25, %cst_21 {dimension_numbers = #tpu.dot_dimension_numbers<[1], [0], [0], [1], [0, 0, 1, 1], [], []>} : vector<8x128xbf16>, vector<128x128xbf16>, vector<8x128xf32> -> vector<8x128xf32>
    %c0_22 = arith.constant 0 : index
    %c0_23 = arith.constant 0 : index
    %27 = vector.load %arg8[%c0_22, %c0_23] : memref<1x128xf32, #tpu.memory_space<vmem>>, vector<1x128xf32>
    %28 = vector.broadcast %27 : vector<1x128xf32> to vector<8x128xf32>
    %29 = arith.addf %26, %28 : vector<8x128xf32>
    %cst_24 = arith.constant 0.000000e+00 : f32
    %30 = vector.broadcast %cst_24 : f32 to vector<8x128xf32>
    %31 = arith.maximumf %29, %30 : vector<8x128xf32>
    %32 = arith.truncf %31 : vector<8x128xf32> to vector<8x128xbf16>
    %c0_25 = arith.constant 0 : index
    %c0_26 = arith.constant 0 : index
    %33 = vector.load %arg9[%c0_25, %c0_26] : memref<128x128xbf16, #tpu.memory_space<vmem>>, vector<128x128xbf16>
    %cst_27 = arith.constant dense<0.000000e+00> : vector<8x128xf32>
    %34 = tpu.matmul %32, %33, %cst_27 {dimension_numbers = #tpu.dot_dimension_numbers<[1], [0], [0], [1], [0, 0, 1, 1], [], []>} : vector<8x128xbf16>, vector<128x128xbf16>, vector<8x128xf32> -> vector<8x128xf32>
    %c0_28 = arith.constant 0 : index
    %c0_29 = arith.constant 0 : index
    %35 = vector.load %arg10[%c0_28, %c0_29] : memref<1x128xf32, #tpu.memory_space<vmem>>, vector<1x128xf32>
    %36 = vector.broadcast %35 : vector<1x128xf32> to vector<8x128xf32>
    %37 = arith.addf %34, %36 : vector<8x128xf32>
    %c0_30 = arith.constant 0 : index
    %c0_31 = arith.constant 0 : index
    %38 = vector.load %arg11[%c0_30, %c0_31] : memref<8x128xf32, #tpu.memory_space<vmem>>, vector<8x128xf32>
    tpu.vector_store %arg11[%c0_30, %c0_31], %37 {strides = array<i32>} : memref<8x128xf32, #tpu.memory_space<vmem>>, vector<8x128xf32>,
    return
  }
}

</mosaic_0001>

<llo_original>
// kernel: sealgnn_pallas.1
$region0: #{sealgnn_pallas.1}
  #allocation0 [shape = 'u32[]', space=smem, size = 0x4, offset = 0x4, fixed_abs, tag = 'smem constant byte address 0x4 - core index']
  #allocation1 [shape = 'u32[144,128]{1,0:T(1,128)}', space=vmem, size = 0x12000, scoped, tag = 'internal scratch']
  %s0 = inlined_call_operand.vmem [shape: bf16[256,256], index: 0, kind: input, shape index: {}]
  %s1 = inlined_call_operand.vmem [shape: bf16[256,128], index: 1, kind: input, shape index: {}]
  %s2 = inlined_call_operand.vmem [shape: bf16[128,128], index: 2, kind: input, shape index: {}]
  %s3 = inlined_call_operand.vmem [shape: f32[1,128], index: 3, kind: input, shape index: {}]
  %s4 = inlined_call_operand.vmem [shape: bf16[128,128], index: 4, kind: input, shape index: {}]
  %s5 = inlined_call_operand.vmem [shape: f32[1,128], index: 5, kind: input, shape index: {}]
  %s6 = inlined_call_operand.vmem [shape: bf16[8,256], index: 6, kind: input, shape index: {}]
  %s7 = inlined_call_operand.vmem [shape: bf16[128,128], index: 7, kind: input, shape index: {}]
  %s8 = inlined_call_operand.vmem [shape: f32[1,128], index: 8, kind: input, shape index: {}]
  %s9 = inlined_call_operand.vmem [shape: bf16[128,128], index: 9, kind: input, shape index: {}]
  %s10 = inlined_call_operand.vmem [shape: f32[1,128], index: 10, kind: input, shape index: {}]
  %s11 = inlined_call_operand.vmem [shape: f32[8,128], index: 11, kind: output, shape index: {}]
  %s12 = sld [smem:[#allocation0]]
  $region54: #{sealgnn_pallas.1} parent=0
    _
  %s14 = ssub.s32 1, %s12
  %s15 = scalar_select 0, %s14, %s12
  // Predicated region
  $region2: #{sealgnn_pallas.1} parent=0 // pred_check
    _
  $region3: #{sealgnn_pallas.1} parent=0 // pred_check_branch
    %17 = sbr.rel (0) target = $region5
  $region4: #{sealgnn_pallas.1} parent=0 // pred_region
    _
  $region5: #{sealgnn_pallas.1} parent=0 // pred_fallthru
    _
  // Predicated region
  $region6: #{sealgnn_pallas.1} parent=0 // pred_check
    _
  $region7: #{sealgnn_pallas.1} parent=0 // pred_check_branch
    %19 = sbr.rel (0) target = $region9
  $region8: #{sealgnn_pallas.1} parent=0 // pred_region
    _
  $region9: #{sealgnn_pallas.1} parent=0 // pred_fallthru
    _
  // Predicated region
  $region10: #{sealgnn_pallas.1} parent=0 // pred_check
    _
  $region11: #{sealgnn_pallas.1} parent=0 // pred_check_branch
    %21 = sbr.rel (0) target = $region13
  $region12: #{sealgnn_pallas.1} parent=0 // pred_region
    _
  $region13: #{sealgnn_pallas.1} parent=0 // pred_fallthru
    _
  // Predicated region
  $region14: #{sealgnn_pallas.1} parent=0 // pred_check
    _
  $region15: #{sealgnn_pallas.1} parent=0 // pred_check_branch
    %23 = sbr.rel (0) target = $region17
  $region16: #{sealgnn_pallas.1} parent=0 // pred_region
    _
  $region17: #{sealgnn_pallas.1} parent=0 // pred_fallthru
    _
  // Predicated region
  $region18: #{sealgnn_pallas.1} parent=0 // pred_check
    _
  $region19: #{sealgnn_pallas.1} parent=0 // pred_check_branch
    %25 = sbr.rel (0) target = $region21
  $region20: #{sealgnn_pallas.1} parent=0 // pred_region
    _
  $region21: #{sealgnn_pallas.1} parent=0 // pred_fallthru
    _
  // Predicated region
  $region22: #{sealgnn_pallas.1} parent=0 // pred_check
    _
  $region23: #{sealgnn_pallas.1} parent=0 // pred_check_branch
    %27 = sbr.rel (0) target = $region25
  $region24: #{sealgnn_pallas.1} parent=0 // pred_region
    _
  $region25: #{sealgnn_pallas.1} parent=0 // pred_fallthru
    _
  // Predicated region
  $region26: #{sealgnn_pallas.1} parent=0 // pred_check
    _
  $region27: #{sealgnn_pallas.1} parent=0 // pred_check_branch
    %29 = sbr.rel (0) target = $region29
  $region28: #{sealgnn_pallas.1} parent=0 // pred_region
    _
  $region29: #{sealgnn_pallas.1} parent=0 // pred_fallthru
    _
  // Predicated region
  $region30: #{sealgnn_pallas.1} parent=0 // pred_check
    _
  $region31: #{sealgnn_pallas.1} parent=0 // pred_check_branch
    %31 = sbr.rel (0) target = $region33
  $region32: #{sealgnn_pallas.1} parent=0 // pred_region
    _
  $region33: #{sealgnn_pallas.1} parent=0 // pred_fallthru
    _
  // Predicated region
  $region34: #{sealgnn_pallas.1} parent=0 // pred_check
    _
  $region35: #{sealgnn_pallas.1} parent=0 // pred_check_branch
    %33 = sbr.rel (0) target = $region37
  $region36: #{sealgnn_pallas.1} parent=0 // pred_region
    _
  $region37: #{sealgnn_pallas.1} parent=0 // pred_fallthru
    _
  // Predicated region
  $region38: #{sealgnn_pallas.1} parent=0 // pred_check
    _
  $region39: #{sealgnn_pallas.1} parent=0 // pred_check_branch
    %35 = sbr.rel (0) target = $region41
  $region40: #{sealgnn_pallas.1} parent=0 // pred_region
    _
  $region41: #{sealgnn_pallas.1} parent=0 // pred_fallthru
    _
  // Predicated region
  $region42: #{sealgnn_pallas.1} parent=0 // pred_check
    _
  $region43: #{sealgnn_pallas.1} parent=0 // pred_check_branch
    %37 = sbr.rel (0) target = $region45
  $region44: #{sealgnn_pallas.1} parent=0 // pred_region
    _
  $region45: #{sealgnn_pallas.1} parent=0 // pred_fallthru
    _
  %v39 = vld [vmem:[%s0] sm:$0xff]
  %v40 = vld [vmem:[%s0 + $0x8] sm:$0xff]
  %v41 = vld [vmem:[%s0 + $0x10] sm:$0xff]
  %v42 = vld [vmem:[%s0 + $0x18] sm:$0xff]
  %v43 = vld [vmem:[%s0 + $0x20] sm:$0xff]
  %v44 = vld [vmem:[%s0 + $0x28] sm:$0xff]
  %v45 = vld [vmem:[%s0 + $0x30] sm:$0xff]
  %v46 = vld [vmem:[%s0 + $0x38] sm:$0xff]
  %v47 = vld [vmem:[%s0 + $0x40] sm:$0xff]
  %v48 = vld [vmem:[%s0 + $0x48] sm:$0xff]
  %v49 = vld [vmem:[%s0 + $0x50] sm:$0xff]
  %v50 = vld [vmem:[%s0 + $0x58] sm:$0xff]
  %v51 = vld [vmem:[%s0 + $0x60] sm:$0xff]
  %v52 = vld [vmem:[%s0 + $0x68] sm:$0xff]
  %v53 = vld [vmem:[%s0 + $0x70] sm:$0xff]
  %v54 = vld [vmem:[%s0 + $0x78] sm:$0xff]
  %v55 = vld [vmem:[%s0 + $0x80] sm:$0xff]
  %v56 = vld [vmem:[%s0 + $0x88] sm:$0xff]
  %v57 = vld [vmem:[%s0 + $0x90] sm:$0xff]
  %v58 = vld [vmem:[%s0 + $0x98] sm:$0xff]
  %v59 = vld [vmem:[%s0 + $0xa0] sm:$0xff]
  %v60 = vld [vmem:[%s0 + $0xa8] sm:$0xff]
  %v61 = vld [vmem:[%s0 + $0xb0] sm:$0xff]
  %v62 = vld [vmem:[%s0 + $0xb8] sm:$0xff]
  %v63 = vld [vmem:[%s0 + $0xc0] sm:$0xff]
  %v64 = vld [vmem:[%s0 + $0xc8] sm:$0xff]
  %v65 = vld [vmem:[%s0 + $0xd0] sm:$0xff]
  %v66 = vld [vmem:[%s0 + $0xd8] sm:$0xff]
  %v67 = vld [vmem:[%s0 + $0xe0] sm:$0xff]
  %v68 = vld [vmem:[%s0 + $0xe8] sm:$0xff]
  %v69 = vld [vmem:[%s0 + $0xf0] sm:$0xff]
  %v70 = vld [vmem:[%s0 + $0xf8] sm:$0xff]
  %v71 = vld [vmem:[%s1] sm:$0xf]
  %v72 = vld [vmem:[%s1 + $0x4] sm:$0xf]
  %v73 = vld [vmem:[%s1 + $0x8] sm:$0xf]
  %v74 = vld [vmem:[%s1 + $0xc] sm:$0xf]
  %v75 = vld [vmem:[%s1 + $0x10] sm:$0xf]
  %v76 = vld [vmem:[%s1 + $0x14] sm:$0xf]
  %v77 = vld [vmem:[%s1 + $0x18] sm:$0xf]
  %v78 = vld [vmem:[%s1 + $0x1c] sm:$0xf]
  %v79 = vld [vmem:[%s1 + $0x20] sm:$0xf]
  %v80 = vld [vmem:[%s1 + $0x24] sm:$0xf]
  %v81 = vld [vmem:[%s1 + $0x28] sm:$0xf]
  %v82 = vld [vmem:[%s1 + $0x2c] sm:$0xf]
  %v83 = vld [vmem:[%s1 + $0x30] sm:$0xf]
  %v84 = vld [vmem:[%s1 + $0x34] sm:$0xf]
  %v85 = vld [vmem:[%s1 + $0x38] sm:$0xf]
  %v86 = vld [vmem:[%s1 + $0x3c] sm:$0xf]
  %v87 = vld [vmem:[%s1 + $0x40] sm:$0xf]
  %v88 = vld [vmem:[%s1 + $0x44] sm:$0xf]
  %v89 = vld [vmem:[%s1 + $0x48] sm:$0xf]
  %v90 = vld [vmem:[%s1 + $0x4c] sm:$0xf]
  %v91 = vld [vmem:[%s1 + $0x50] sm:$0xf]
  %v92 = vld [vmem:[%s1 + $0x54] sm:$0xf]
  %v93 = vld [vmem:[%s1 + $0x58] sm:$0xf]
  %v94 = vld [vmem:[%s1 + $0x5c] sm:$0xf]
  %v95 = vld [vmem:[%s1 + $0x60] sm:$0xf]
  %v96 = vld [vmem:[%s1 + $0x64] sm:$0xf]
  %v97 = vld [vmem:[%s1 + $0x68] sm:$0xf]
  %v98 = vld [vmem:[%s1 + $0x6c] sm:$0xf]
  %v99 = vld [vmem:[%s1 + $0x70] sm:$0xf]
  %v100 = vld [vmem:[%s1 + $0x74] sm:$0xf]
  %v101 = vld [vmem:[%s1 + $0x78] sm:$0xf]
  %v102 = vld [vmem:[%s1 + $0x7c] sm:$0xf]
  %v103 = vld [vmem:[%s2] sm:$0xf]
  %v104 = vld [vmem:[%s2 + $0x4] sm:$0xf]
  %v105 = vld [vmem:[%s2 + $0x8] sm:$0xf]
  %v106 = vld [vmem:[%s2 + $0xc] sm:$0xf]
  %v107 = vld [vmem:[%s2 + $0x10] sm:$0xf]
  %v108 = vld [vmem:[%s2 + $0x14] sm:$0xf]
  %v109 = vld [vmem:[%s2 + $0x18] sm:$0xf]
  %v110 = vld [vmem:[%s2 + $0x1c] sm:$0xf]
  %v111 = vld [vmem:[%s2 + $0x20] sm:$0xf]
  %v112 = vld [vmem:[%s2 + $0x24] sm:$0xf]
  %v113 = vld [vmem:[%s2 + $0x28] sm:$0xf]
  %v114 = vld [vmem:[%s2 + $0x2c] sm:$0xf]
  %v115 = vld [vmem:[%s2 + $0x30] sm:$0xf]
  %v116 = vld [vmem:[%s2 + $0x34] sm:$0xf]
  %v117 = vld [vmem:[%s2 + $0x38] sm:$0xf]
  %v118 = vld [vmem:[%s2 + $0x3c] sm:$0xf]
  %v151 = vunpack.c.l.b16 %v71
  %v152 = vunpack.c.l.b16 %v72
  %v153 = vunpack.c.l.b16 %v73
  %v154 = vunpack.c.l.b16 %v74
  %v155 = vunpack.c.l.b16 %v75
  %v156 = vunpack.c.l.b16 %v76
  %v157 = vunpack.c.l.b16 %v77
  %v158 = vunpack.c.l.b16 %v78
  %v159 = vunpack.c.l.b16 %v79
  %v160 = vunpack.c.l.b16 %v80
  %v161 = vunpack.c.l.b16 %v81
  %v162 = vunpack.c.l.b16 %v82
  %v163 = vunpack.c.l.b16 %v83
  %v164 = vunpack.c.l.b16 %v84
  %v165 = vunpack.c.l.b16 %v85
  %v166 = vunpack.c.l.b16 %v86
  %v167 = vunpack.c.l.b16 %v87
  %v168 = vunpack.c.l.b16 %v88
  %v169 = vunpack.c.l.b16 %v89
  %v170 = vunpack.c.l.b16 %v90
  %v171 = vunpack.c.l.b16 %v91
  %v172 = vunpack.c.l.b16 %v92
  %v173 = vunpack.c.l.b16 %v93
  %v174 = vunpack.c.l.b16 %v94
  %v175 = vunpack.c.l.b16 %v95
  %v176 = vunpack.c.l.b16 %v96
  %v177 = vunpack.c.l.b16 %v97
  %v178 = vunpack.c.l.b16 %v98
  %v179 = vunpack.c.l.b16 %v99
  %v180 = vunpack.c.l.b16 %v100
  %v181 = vunpack.c.l.b16 %v101
  %v182 = vunpack.c.l.b16 %v102
  %v183 = vpack.c.b16 %v152, %v151
  %v184 = vpack.c.b16 %v154, %v153
  %v185 = vpack.c.b16 %v156, %v155
  %v186 = vpack.c.b16 %v158, %v157
  %v187 = vpack.c.b16 %v160, %v159
  %v188 = vpack.c.b16 %v162, %v161
  %v189 = vpack.c.b16 %v164, %v163
  %v190 = vpack.c.b16 %v166, %v165
  %v191 = vpack.c.b16 %v168, %v167
  %v192 = vpack.c.b16 %v170, %v169
  %v193 = vpack.c.b16 %v172, %v171
  %v194 = vpack.c.b16 %v174, %v173
  %v195 = vpack.c.b16 %v176, %v175
  %v196 = vpack.c.b16 %v178, %v177
  %v197 = vpack.c.b16 %v180, %v179
  %v198 = vpack.c.b16 %v182, %v181
  %v231 = vunpack.c.l.b16 %v103
  %v232 = vunpack.c.l.b16 %v104
  %v233 = vunpack.c.l.b16 %v105
  %v234 = vunpack.c.l.b16 %v106
  %v235 = vunpack.c.l.b16 %v107
  %v236 = vunpack.c.l.b16 %v108
  %v237 = vunpack.c.l.b16 %v109
  %v238 = vunpack.c.l.b16 %v110
  %v239 = vunpack.c.l.b16 %v111
  %v240 = vunpack.c.l.b16 %v112
  %v241 = vunpack.c.l.b16 %v113
  %v242 = vunpack.c.l.b16 %v114
  %v243 = vunpack.c.l.b16 %v115
  %v244 = vunpack.c.l.b16 %v116
  %v245 = vunpack.c.l.b16 %v117
  %v246 = vunpack.c.l.b16 %v118
  %v247 = vpack.c.b16 %v232, %v231
  %v248 = vpack.c.b16 %v234, %v233
  %v249 = vpack.c.b16 %v236, %v235
  %v250 = vpack.c.b16 %v238, %v237
  %v251 = vpack.c.b16 %v240, %v239
  %v252 = vpack.c.b16 %v242, %v241
  %v253 = vpack.c.b16 %v244, %v243
  %v254 = vpack.c.b16 %v246, %v245
  %263 = vmatprep.subr.bf16.mxu0 0
  %264 = vmatpush1.bf16.msra.mxu0 %v247
  %265 = vmatprep.subr.bf16.mxu0 0
  %266 = vmatpush1.bf16.msra.mxu0 %v248
  %267 = vmatprep.subr.bf16.mxu0 0
  %268 = vmatpush1.bf16.msra.mxu0 %v249
  %269 = vmatprep.subr.bf16.mxu0 0
  %270 = vmatpush1.bf16.msra.mxu0 %v250
  %271 = vmatprep.subr.bf16.mxu0 0
  %272 = vmatpush1.bf16.msra.mxu0 %v251
  %273 = vmatprep.subr.bf16.mxu0 0
  %274 = vmatpush1.bf16.msra.mxu0 %v252
  %275 = vmatprep.subr.bf16.mxu0 0
  %276 = vmatpush1.bf16.msra.mxu0 %v253
  %277 = vmatprep.subr.bf16.mxu0 0
  %278 = vmatpush1.bf16.msra.mxu0 %v254
  %279 = vmatprep.subr.bf16.mxu0 0
  %280 = vmatpush1.bf16.msra.mxu0 0
  %281 = vmatprep.subr.bf16.mxu0 0
  %282 = vmatpush1.bf16.msra.mxu0 0
  %283 = vmatprep.subr.bf16.mxu0 0
  %284 = vmatpush1.bf16.msra.mxu0 0
  %285 = vmatprep.subr.bf16.mxu0 0
  %286 = vmatpush1.bf16.msra.mxu0 0
  %287 = vmatprep.subr.bf16.mxu0 0
  %288 = vmatpush1.bf16.msra.mxu0 0
  %289 = vmatprep.subr.bf16.mxu0 0
  %290 = vmatpush1.bf16.msra.mxu0 0
  %291 = vmatprep.subr.bf16.mxu0 0
  %292 = vmatpush1.bf16.msra.mxu0 0
  %293 = vmatprep.subr.bf16.mxu0 0
  %294 = vmatpush1.bf16.msra.mxu0 0
  %295 = vmatprep.mubr.bf16.mxu0 0
  %296 = vmatmul.mubr.bf16.gmra.mrb[0].mxu0 %v183
  %v297 = vpop.f32.mrb[0].mxu0
  %v298 = vadd.f32 0.0, %v297
  %v299 = vpop.f32.mrb[0].mxu0
  %v300 = vpop.f32.mrb[0].mxu0
  %v301 = vadd.f32 0.0, %v300
  %v302 = vpop.f32.mrb[0].mxu0
  %303 = vmatprep.mubr.bf16.mxu0 0
  %304 = vmatmul.mubr.bf16.gmra.mrb[0].mxu0 %v184
  %v305 = vpop.f32.mrb[0].mxu0
  %v306 = vadd.f32 0.0, %v305
  %v307 = vpop.f32.mrb[0].mxu0
  %v308 = vpop.f32.mrb[0].mxu0
  %v309 = vadd.f32 0.0, %v308
  %v310 = vpop.f32.mrb[0].mxu0
  %311 = vmatprep.mubr.bf16.mxu0 0
  %312 = vmatmul.mubr.bf16.gmra.mrb[0].mxu0 %v185
  %v313 = vpop.f32.mrb[0].mxu0
  %v314 = vadd.f32 0.0, %v313
  %v315 = vpop.f32.mrb[0].mxu0
  %v316 = vpop.f32.mrb[0].mxu0
  %v317 = vadd.f32 0.0, %v316
  %v318 = vpop.f32.mrb[0].mxu0
  %319 = vmatprep.mubr.bf16.mxu0 0
  %320 = vmatmul.mubr.bf16.gmra.mrb[0].mxu0 %v186
  %v321 = vpop.f32.mrb[0].mxu0
  %v322 = vadd.f32 0.0, %v321
  %v323 = vpop.f32.mrb[0].mxu0
  %v324 = vpop.f32.mrb[0].mxu0
  %v325 = vadd.f32 0.0, %v324
  %v326 = vpop.f32.mrb[0].mxu0
  %327 = vmatprep.mubr.bf16.mxu0 0
  %328 = vmatmul.mubr.bf16.gmra.mrb[0].mxu0 %v187
  %v329 = vpop.f32.mrb[0].mxu0
  %v330 = vadd.f32 0.0, %v329
  %v331 = vpop.f32.mrb[0].mxu0
  %v332 = vpop.f32.mrb[0].mxu0
  %v333 = vadd.f32 0.0, %v332
  %v334 = vpop.f32.mrb[0].mxu0
  %335 = vmatprep.mubr.bf16.mxu0 0
  %336 = vmatmul.mubr.bf16.gmra.mrb[0].mxu0 %v188
  %v337 = vpop.f32.mrb[0].mxu0
  %v338 = vadd.f32 0.0, %v337
  %v339 = vpop.f32.mrb[0].mxu0
  %v340 = vpop.f32.mrb[0].mxu0
  %v341 = vadd.f32 0.0, %v340
  %v342 = vpop.f32.mrb[0].mxu0
  %343 = vmatprep.mubr.bf16.mxu0 0
  %344 = vmatmul.mubr.bf16.gmra.mrb[0].mxu0 %v189
  %v345 = vpop.f32.mrb[0].mxu0
  %v346 = vadd.f32 0.0, %v345
  %v347 = vpop.f32.mrb[0].mxu0
  %v348 = vpop.f32.mrb[0].mxu0
  %v349 = vadd.f32 0.0, %v348
  %v350 = vpop.f32.mrb[0].mxu0
  %351 = vmatprep.mubr.bf16.mxu0 0
  %352 = vmatmul.mubr.bf16.gmra.mrb[0].mxu0 %v190
  %v353 = vpop.f32.mrb[0].mxu0
  %v354 = vadd.f32 0.0, %v353
  %v355 = vpop.f32.mrb[0].mxu0
  %v356 = vpop.f32.mrb[0].mxu0
  %v357 = vadd.f32 0.0, %v356
  %v358 = vpop.f32.mrb[0].mxu0
  %359 = vmatprep.mubr.bf16.mxu0 0
  %360 = vmatmul.mubr.bf16.gmra.mrb[0].mxu0 %v191
  %v361 = vpop.f32.mrb[0].mxu0
  %v362 = vadd.f32 0.0, %v361
  %v363 = vpop.f32.mrb[0].mxu0
  %v364 = vpop.f32.mrb[0].mxu0
  %v365 = vadd.f32 0.0, %v364
  %v366 = vpop.f32.mrb[0].mxu0
  %367 = vmatprep.mubr.bf16.mxu0 0
  %368 = vmatmul.mubr.bf16.gmra.mrb[0].mxu0 %v192
  %v369 = vpop.f32.mrb[0].mxu0
  %v370 = vadd.f32 0.0, %v369
  %v371 = vpop.f32.mrb[0].mxu0
  %v372 = vpop.f32.mrb[0].mxu0
  %v373 = vadd.f32 0.0, %v372
  %v374 = vpop.f32.mrb[0].mxu0
  %375 = vmatprep.mubr.bf16.mxu0 0
  %376 = vmatmul.mubr.bf16.gmra.mrb[0].mxu0 %v193
  %v377 = vpop.f32.mrb[0].mxu0
  %v378 = vadd.f32 0.0, %v377
  %v379 = vpop.f32.mrb[0].mxu0
  %v380 = vpop.f32.mrb[0].mxu0
  %v381 = vadd.f32 0.0, %v380
  %v382 = vpop.f32.mrb[0].mxu0
  %383 = vmatprep.mubr.bf16.mxu0 0
  %384 = vmatmul.mubr.bf16.gmra.mrb[0].mxu0 %v194
  %v385 = vpop.f32.mrb[0].mxu0
  %v386 = vadd.f32 0.0, %v385
  %v387 = vpop.f32.mrb[0].mxu0
  %v388 = vpop.f32.mrb[0].mxu0
  %v389 = vadd.f32 0.0, %v388
  %v390 = vpop.f32.mrb[0].mxu0
  %391 = vmatprep.mubr.bf16.mxu0 0
  %392 = vmatmul.mubr.bf16.gmra.mrb[0].mxu0 %v195
  %v393 = vpop.f32.mrb[0].mxu0
  %v394 = vadd.f32 0.0, %v393
  %v395 = vpop.f32.mrb[0].mxu0
  %v396 = vpop.f32.mrb[0].mxu0
  %v397 = vadd.f32 0.0, %v396
  %v398 = vpop.f32.mrb[0].mxu0
  %399 = vmatprep.mubr.bf16.mxu0 0
  %400 = vmatmul.mubr.bf16.gmra.mrb[0].mxu0 %v196
  %v401 = vpop.f32.mrb[0].mxu0
  %v402 = vadd.f32 0.0, %v401
  %v403 = vpop.f32.mrb[0].mxu0
  %v404 = vpop.f32.mrb[0].mxu0
  %v405 = vadd.f32 0.0, %v404
  %v406 = vpop.f32.mrb[0].mxu0
  %407 = vmatprep.mubr.bf16.mxu0 0
  %408 = vmatmul.mubr.bf16.gmra.mrb[0].mxu0 %v197
  %v409 = vpop.f32.mrb[0].mxu0
  %v410 = vadd.f32 0.0, %v409
  %v411 = vpop.f32.mrb[0].mxu0
  %v412 = vpop.f32.mrb[0].mxu0
  %v413 = vadd.f32 0.0, %v412
  %v414 = vpop.f32.mrb[0].mxu0
  %415 = vmatprep.mubr.bf16.mxu0 0
  %416 = vmatmul.mubr.bf16.gmra.mrb[0].mxu0 %v198
  %v417 = vpop.f32.mrb[0].mxu0
  %v418 = vadd.f32 0.0, %v417
  %v419 = vpop.f32.mrb[0].mxu0
  %v420 = vpop.f32.mrb[0].mxu0
  %v421 = vadd.f32 0.0, %v420
  %v422 = vpop.f32.mrb[0].mxu0
  %423 = vdwg.mxu0
  %v424 = vpack.c.bf16 %v301, %v298
  %v425 = vpack.c.bf16 %v309, %v306
  %v426 = vpack.c.bf16 %v317, %v314
  %v427 = vpack.c.bf16 %v325, %v322
  %v428 = vpack.c.bf16 %v333, %v330
  %v429 = vpack.c.bf16 %v341, %v338
  %v430 = vpack.c.bf16 %v349, %v346
  %v431 = vpack.c.bf16 %v357, %v354
  %v432 = vpack.c.bf16 %v365, %v362
  %v433 = vpack.c.bf16 %v373, %v370
  %v434 = vpack.c.bf16 %v381, %v378
  %v435 = vpack.c.bf16 %v389, %v386
  %v436 = vpack.c.bf16 %v397, %v394
  %v437 = vpack.c.bf16 %v405, %v402
  %v438 = vpack.c.bf16 %v413, %v410
  %v439 = vpack.c.bf16 %v421, %v418
  %v440 = vld [vmem:[%s3] sm:$0x1]
  %v442 = vlaneseq
  %v443 = vshrl.u32 %v442, 7
  %v444 = vsub.s32 0, %v443
  %v445 = vrot.slane %v440, %v444
  %v479 = vunpack.c.l.b16 %v39
  %v480 = vunpack.c.h.b16 %v39
  %v481 = vunpack.c.l.b16 %v40
  %v482 = vunpack.c.h.b16 %v40
  %v483 = vunpack.c.l.b16 %v41
  %v484 = vunpack.c.h.b16 %v41
  %v485 = vunpack.c.l.b16 %v42
  %v486 = vunpack.c.h.b16 %v42
  %v487 = vunpack.c.l.b16 %v43
  %v488 = vunpack.c.h.b16 %v43
  %v489 = vunpack.c.l.b16 %v44
  %v490 = vunpack.c.h.b16 %v44
  %v491 = vunpack.c.l.b16 %v45
  %v492 = vunpack.c.h.b16 %v45
  %v493 = vunpack.c.l.b16 %v46
  %v494 = vunpack.c.h.b16 %v46
  %v495 = vunpack.c.l.b16 %v47
  %v496 = vunpack.c.h.b16 %v47
  %v497 = vunpack.c.l.b16 %v48
  %v498 = vunpack.c.h.b16 %v48
  %v499 = vunpack.c.l.b16 %v49
  %v500 = vunpack.c.h.b16 %v49
  %v501 = vunpack.c.l.b16 %v50
  %v502 = vunpack.c.h.b16 %v50
  %v503 = vunpack.c.l.b16 %v51
  %v504 = vunpack.c.h.b16 %v51
  %v505 = vunpack.c.l.b16 %v52
  %v506 = vunpack.c.h.b16 %v52
  %v507 = vunpack.c.l.b16 %v53
  %v508 = vunpack.c.h.b16 %v53
  %v509 = vunpack.c.l.b16 %v54
  %v510 = vunpack.c.h.b16 %v54
  %v511 = vunpack.c.l.b16 %v55
  %v512 = vunpack.c.h.b16 %v55
  %v513 = vunpack.c.l.b16 %v56
  %v514 = vunpack.c.h.b16 %v56
  %v515 = vunpack.c.l.b16 %v57
  %v516 = vunpack.c.h.b16 %v57
  %v517 = vunpack.c.l.b16 %v58
  %v518 = vunpack.c.h.b16 %v58
  %v519 = vunpack.c.l.b16 %v59
  %v520 = vunpack.c.h.b16 %v59
  %v521 = vunpack.c.l.b16 %v60
  %v522 = vunpack.c.h.b16 %v60
  %v523 = vunpack.c.l.b16 %v61
  %v524 = vunpack.c.h.b16 %v61
  %v525 = vunpack.c.l.b16 %v62
  %v526 = vunpack.c.h.b16 %v62
  %v527 = vunpack.c.l.b16 %v63
  %v528 = vunpack.c.h.b16 %v63
  %v529 = vunpack.c.l.b16 %v64
  %v530 = vunpack.c.h.b16 %v64
  %v531 = vunpack.c.l.b16 %v65
  %v532 = vunpack.c.h.b16 %v65
  %v533 = vunpack.c.l.b16 %v66
  %v534 = vunpack.c.h.b16 %v66
  %v535 = vunpack.c.l.b16 %v67
  %v536 = vunpack.c.h.b16 %v67
  %v537 = vunpack.c.l.b16 %v68
  %v538 = vunpack.c.h.b16 %v68
  %v539 = vunpack.c.l.b16 %v69
  %v540 = vunpack.c.h.b16 %v69
  %v541 = vunpack.c.l.b16 %v70
  %v542 = vunpack.c.h.b16 %v70
  %v543 = vpack.c.b16 %v481, %v479
  %v544 = vpack.c.b16 %v482, %v480
  %v545 = vpack.c.b16 %v485, %v483
  %v546 = vpack.c.b16 %v486, %v484
  %v547 = vpack.c.b16 %v489, %v487
  %v548 = vpack.c.b16 %v490, %v488
  %v549 = vpack.c.b16 %v493, %v491
  %v550 = vpack.c.b16 %v494, %v492
  %v551 = vpack.c.b16 %v497, %v495
  %v552 = vpack.c.b16 %v498, %v496
  %v553 = vpack.c.b16 %v501, %v499
  %v554 = vpack.c.b16 %v502, %v500
  %v555 = vpack.c.b16 %v505, %v503
  %v556 = vpack.c.b16 %v506, %v504
  %v557 = vpack.c.b16 %v509, %v507
  %v558 = vpack.c.b16 %v510, %v508
  %v559 = vpack.c.b16 %v513, %v511
  %v560 = vpack.c.b16 %v514, %v512
  %v561 = vpack.c.b16 %v517, %v515
  %v562 = vpack.c.b16 %v518, %v516
  %v563 = vpack.c.b16 %v521, %v519
  %v564 = vpack.c.b16 %v522, %v520
  %v565 = vpack.c.b16 %v525, %v523
  %v566 = vpack.c.b16 %v526, %v524
  %v567 = vpack.c.b16 %v529, %v527
  %v568 = vpack.c.b16 %v530, %v528
  %v569 = vpack.c.b16 %v533, %v531
  %v570 = vpack.c.b16 %v534, %v532
  %v571 = vpack.c.b16 %v537, %v535
  %v572 = vpack.c.b16 %v538, %v536
  %v573 = vpack.c.b16 %v541, %v539
  %v574 = vpack.c.b16 %v542, %v540
  %607 = vmatprep.subr.bf16.mxu0 0
  %608 = vmatpush1.bf16.msra.mxu0 %v424
  %609 = vmatprep.subr.bf16.mxu0 0
  %610 = vmatpush1.bf16.msra.mxu0 %v425
  %611 = vmatprep.subr.bf16.mxu0 0
  %612 = vmatpush1.bf16.msra.mxu0 %v426
  %613 = vmatprep.subr.bf16.mxu0 0
  %614 = vmatpush1.bf16.msra.mxu0 %v427
  %615 = vmatprep.subr.bf16.mxu0 0
  %616 = vmatpush1.bf16.msra.mxu0 %v428
  %617 = vmatprep.subr.bf16.mxu0 0
  %618 = vmatpush1.bf16.msra.mxu0 %v429
  %619 = vmatprep.subr.bf16.mxu0 0
  %620 = vmatpush1.bf16.msra.mxu0 %v430
  %621 = vmatprep.subr.bf16.mxu0 0
  %622 = vmatpush1.bf16.msra.mxu0 %v431
  %623 = vmatprep.subr.bf16.mxu0 0
  %624 = vmatpush1.bf16.msra.mxu0 %v432
  %625 = vmatprep.subr.bf16.mxu0 0
  %626 = vmatpush1.bf16.msra.mxu0 %v433
  %627 = vmatprep.subr.bf16.mxu0 0
  %628 = vmatpush1.bf16.msra.mxu0 %v434
  %629 = vmatprep.subr.bf16.mxu0 0
  %630 = vmatpush1.bf16.msra.mxu0 %v435
  %631 = vmatprep.subr.bf16.mxu0 0
  %632 = vmatpush1.bf16.msra.mxu0 %v436
  %633 = vmatprep.subr.bf16.mxu0 0
  %634 = vmatpush1.bf16.msra.mxu0 %v437
  %635 = vmatprep.subr.bf16.mxu0 0
  %636 = vmatpush1.bf16.msra.mxu0 %v438
  %637 = vmatprep.subr.bf16.mxu0 0
  %638 = vmatpush1.bf16.msra.mxu0 %v439
  %639 = vmatprep.mubr.bf16.mxu0 %v544
  %640 = vmatmul.mubr.bf16.gmra.mrb[0].mxu0 %v543
  %v641 = vpop.f32.mrb[0].mxu0
  %v642 = vadd.f32 %v445, %v641
  %v643 = vpop.f32.mrb[0].mxu0
  %v644 = vpop.f32.mrb[0].mxu0
  %v645 = vadd.f32 %v445, %v644
  %v646 = vpop.f32.mrb[0].mxu0
  %647 = vmatprep.mubr.bf16.mxu0 %v546
  %648 = vmatmul.mubr.bf16.gmra.mrb[0].mxu0 %v545
  %v649 = vpop.f32.mrb[0].mxu0
  %v650 = vadd.f32 %v445, %v649
  %v651 = vpop.f32.mrb[0].mxu0
  %v652 = vpop.f32.mrb[0].mxu0
  %v653 = vadd.f32 %v445, %v652
  %v654 = vpop.f32.mrb[0].mxu0
  %655 = vmatprep.mubr.bf16.mxu0 %v548
  %656 = vmatmul.mubr.bf16.gmra.mrb[0].mxu0 %v547
  %v657 = vpop.f32.mrb[0].mxu0
  %v658 = vadd.f32 %v445, %v657
  %v659 = vpop.f32.mrb[0].mxu0
  %v660 = vpop.f32.mrb[0].mxu0
  %v661 = vadd.f32 %v445, %v660
  %v662 = vpop.f32.mrb[0].mxu0
  %663 = vmatprep.mubr.bf16.mxu0 %v550
  %664 = vmatmul.mubr.bf16.gmra.mrb[0].mxu0 %v549
  %v665 = vpop.f32.mrb[0].mxu0
  %v666 = vadd.f32 %v445, %v665
  %v667 = vpop.f32.mrb[0].mxu0
  %v668 = vpop.f32.mrb[0].mxu0
  %v669 = vadd.f32 %v445, %v668
  %v670 = vpop.f32.mrb[0].mxu0
  %671 = vmatprep.mubr.bf16.mxu0 %v552
  %672 = vmatmul.mubr.bf16.gmra.mrb[0].mxu0 %v551
  %v673 = vpop.f32.mrb[0].mxu0
  %v674 = vadd.f32 %v445, %v673
  %v675 = vpop.f32.mrb[0].mxu0
  %v676 = vpop.f32.mrb[0].mxu0
  %v677 = vadd.f32 %v445, %v676
  %v678 = vpop.f32.mrb[0].mxu0
  %679 = vmatprep.mubr.bf16.mxu0 %v554
  %680 = vmatmul.mubr.bf16.gmra.mrb[0].mxu0 %v553
  %v681 = vpop.f32.mrb[0].mxu0
  %v682 = vadd.f32 %v445, %v681
  %v683 = vpop.f32.mrb[0].mxu0
  %v684 = vpop.f32.mrb[0].mxu0
  %v685 = vadd.f32 %v445, %v684
  %v686 = vpop.f32.mrb[0].mxu0
  %687 = vmatprep.mubr.bf16.mxu0 %v556
  %688 = vmatmul.mubr.bf16.gmra.mrb[0].mxu0 %v555
  %v689 = vpop.f32.mrb[0].mxu0
  %v690 = vadd.f32 %v445, %v689
  %v691 = vpop.f32.mrb[0].mxu0
  %v692 = vpop.f32.mrb[0].mxu0
  %v693 = vadd.f32 %v445, %v692
  %v694 = vpop.f32.mrb[0].mxu0
  %695 = vmatprep.mubr.bf16.mxu0 %v558
  %696 = vmatmul.mubr.bf16.gmra.mrb[0].mxu0 %v557
  %v697 = vpop.f32.mrb[0].mxu0
  %v698 = vadd.f32 %v445, %v697
  %v699 = vpop.f32.mrb[0].mxu0
  %v700 = vpop.f32.mrb[0].mxu0
  %v701 = vadd.f32 %v445, %v700
  %v702 = vpop.f32.mrb[0].mxu0
  %703 = vmatprep.mubr.bf16.mxu0 %v560
  %704 = vmatmul.mubr.bf16.gmra.mrb[0].mxu0 %v559
  %v705 = vpop.f32.mrb[0].mxu0
  %v706 = vadd.f32 %v445, %v705
  %v707 = vpop.f32.mrb[0].mxu0
  %v708 = vpop.f32.mrb[0].mxu0
  %v709 = vadd.f32 %v445, %v708
  %v710 = vpop.f32.mrb[0].mxu0
  %711 = vmatprep.mubr.bf16.mxu0 %v562
  %712 = vmatmul.mubr.bf16.gmra.mrb[0].mxu0 %v561
  %v713 = vpop.f32.mrb[0].mxu0
  %v714 = vadd.f32 %v445, %v713
  %v715 = vpop.f32.mrb[0].mxu0
  %v716 = vpop.f32.mrb[0].mxu0
  %v717 = vadd.f32 %v445, %v716
  %v718 = vpop.f32.mrb[0].mxu0
  %719 = vmatprep.mubr.bf16.mxu0 %v564
  %720 = vmatmul.mubr.bf16.gmra.mrb[0].mxu0 %v563
  %v721 = vpop.f32.mrb[0].mxu0
  %v722 = vadd.f32 %v445, %v721
  %v723 = vpop.f32.mrb[0].mxu0
  %v724 = vpop.f32.mrb[0].mxu0
  %v725 = vadd.f32 %v445, %v724
  %v726 = vpop.f32.mrb[0].mxu0
  %727 = vmatprep.mubr.bf16.mxu0 %v566
  %728 = vmatmul.mubr.bf16.gmra.mrb[0].mxu0 %v565
  %v729 = vpop.f32.mrb[0].mxu0
  %v730 = vadd.f32 %v445, %v729
  %v731 = vpop.f32.mrb[0].mxu0
  %v732 = vpop.f32.mrb[0].mxu0
  %v733 = vadd.f32 %v445, %v732
  %v734 = vpop.f32.mrb[0].mxu0
  %735 = vmatprep.mubr.bf16.mxu0 %v568
  %736 = vmatmul.mubr.bf16.gmra.mrb[0].mxu0 %v567
  %v737 = vpop.f32.mrb[0].mxu0
  %v738 = vadd.f32 %v445, %v737
  %v739 = vpop.f32.mrb[0].mxu0
  %v740 = vpop.f32.mrb[0].mxu0
  %v741 = vadd.f32 %v445, %v740
  %v742 = vpop.f32.mrb[0].mxu0
  %743 = vmatprep.mubr.bf16.mxu0 %v570
  %744 = vmatmul.mubr.bf16.gmra.mrb[0].mxu0 %v569
  %v745 = vpop.f32.mrb[0].mxu0
  %v746 = vadd.f32 %v445, %v745
  %v747 = vpop.f32.mrb[0].mxu0
  %v748 = vpop.f32.mrb[0].mxu0
  %v749 = vadd.f32 %v445, %v748
  %v750 = vpop.f32.mrb[0].mxu0
  %751 = vmatprep.mubr.bf16.mxu0 %v572
  %752 = vmatmul.mubr.bf16.gmra.mrb[0].mxu0 %v571
  %v753 = vpop.f32.mrb[0].mxu0
  %v754 = vadd.f32 %v445, %v753
  %v755 = vpop.f32.mrb[0].mxu0
  %v756 = vpop.f32.mrb[0].mxu0
  %v757 = vadd.f32 %v445, %v756
  %v758 = vpop.f32.mrb[0].mxu0
  %759 = vmatprep.mubr.bf16.mxu0 %v574
  %760 = vmatmul.mubr.bf16.gmra.mrb[0].mxu0 %v573
  %v761 = vpop.f32.mrb[0].mxu0
  %v762 = vadd.f32 %v445, %v761
  %v763 = vpop.f32.mrb[0].mxu0
  %v764 = vpop.f32.mrb[0].mxu0
  %v765 = vadd.f32 %v445, %v764
  %v766 = vpop.f32.mrb[0].mxu0
  %767 = vdwg.mxu0
  %v768 = vmax.f32 %v642, 0.0
  %v769 = vmax.f32 %v645, 0.0
  %v770 = vmax.f32 %v650, 0.0
  %v771 = vmax.f32 %v653, 0.0
  %v772 = vmax.f32 %v658, 0.0
  %v773 = vmax.f32 %v661, 0.0
  %v774 = vmax.f32 %v666, 0.0
  %v775 = vmax.f32 %v669, 0.0
  %v776 = vmax.f32 %v674, 0.0
  %v777 = vmax.f32 %v677, 0.0
  %v778 = vmax.f32 %v682, 0.0
  %v779 = vmax.f32 %v685, 0.0
  %v780 = vmax.f32 %v690, 0.0
  %v781 = vmax.f32 %v693, 0.0
  %v782 = vmax.f32 %v698, 0.0
  %v783 = vmax.f32 %v701, 0.0
  %v784 = vmax.f32 %v706, 0.0
  %v785 = vmax.f32 %v709, 0.0
  %v786 = vmax.f32 %v714, 0.0
  %v787 = vmax.f32 %v717, 0.0
  %v788 = vmax.f32 %v722, 0.0
  %v789 = vmax.f32 %v725, 0.0
  %v790 = vmax.f32 %v730, 0.0
  %v791 = vmax.f32 %v733, 0.0
  %v792 = vmax.f32 %v738, 0.0
  %v793 = vmax.f32 %v741, 0.0
  %v794 = vmax.f32 %v746, 0.0
  %v795 = vmax.f32 %v749, 0.0
  %v796 = vmax.f32 %v754, 0.0
  %v797 = vmax.f32 %v757, 0.0
  %v798 = vmax.f32 %v762, 0.0
  %v799 = vmax.f32 %v765, 0.0
  %v800 = vpack.c.bf16 %v769, %v768
  %v801 = vpack.c.bf16 %v771, %v770
  %v802 = vpack.c.bf16 %v773, %v772
  %v803 = vpack.c.bf16 %v775, %v774
  %v804 = vpack.c.bf16 %v777, %v776
  %v805 = vpack.c.bf16 %v779, %v778
  %v806 = vpack.c.bf16 %v781, %v780
  %v807 = vpack.c.bf16 %v783, %v782
  %v808 = vpack.c.bf16 %v785, %v784
  %v809 = vpack.c.bf16 %v787, %v786
  %v810 = vpack.c.bf16 %v789, %v788
  %v811 = vpack.c.bf16 %v791, %v790
  %v812 = vpack.c.bf16 %v793, %v792
  %v813 = vpack.c.bf16 %v795, %v794
  %v814 = vpack.c.bf16 %v797, %v796
  %v815 = vpack.c.bf16 %v799, %v798
  %v816 = vld [vmem:[%s4] sm:$0xf]
  %v817 = vld [vmem:[%s4 + $0x4] sm:$0xf]
  %v818 = vld [vmem:[%s4 + $0x8] sm:$0xf]
  %v819 = vld [vmem:[%s4 + $0xc] sm:$0xf]
  %v820 = vld [vmem:[%s4 + $0x10] sm:$0xf]
  %v821 = vld [vmem:[%s4 + $0x14] sm:$0xf]
  %v822 = vld [vmem:[%s4 + $0x18] sm:$0xf]
  %v823 = vld [vmem:[%s4 + $0x1c] sm:$0xf]
  %v824 = vld [vmem:[%s4 + $0x20] sm:$0xf]
  %v825 = vld [vmem:[%s4 + $0x24] sm:$0xf]
  %v826 = vld [vmem:[%s4 + $0x28] sm:$0xf]
  %v827 = vld [vmem:[%s4 + $0x2c] sm:$0xf]
  %v828 = vld [vmem:[%s4 + $0x30] sm:$0xf]
  %v829 = vld [vmem:[%s4 + $0x34] sm:$0xf]
  %v830 = vld [vmem:[%s4 + $0x38] sm:$0xf]
  %v831 = vld [vmem:[%s4 + $0x3c] sm:$0xf]
  %v848 = vunpack.c.l.b16 %v816
  %v849 = vunpack.c.l.b16 %v817
  %v850 = vunpack.c.l.b16 %v818
  %v851 = vunpack.c.l.b16 %v819
  %v852 = vunpack.c.l.b16 %v820
  %v853 = vunpack.c.l.b16 %v821
  %v854 = vunpack.c.l.b16 %v822
  %v855 = vunpack.c.l.b16 %v823
  %v856 = vunpack.c.l.b16 %v824
  %v857 = vunpack.c.l.b16 %v825
  %v858 = vunpack.c.l.b16 %v826
  %v859 = vunpack.c.l.b16 %v827
  %v860 = vunpack.c.l.b16 %v828
  %v861 = vunpack.c.l.b16 %v829
  %v862 = vunpack.c.l.b16 %v830
  %v863 = vunpack.c.l.b16 %v831
  %v864 = vpack.c.b16 %v849, %v848
  %v865 = vpack.c.b16 %v851, %v850
  %v866 = vpack.c.b16 %v853, %v852
  %v867 = vpack.c.b16 %v855, %v854
  %v868 = vpack.c.b16 %v857, %v856
  %v869 = vpack.c.b16 %v859, %v858
  %v870 = vpack.c.b16 %v861, %v860
  %v871 = vpack.c.b16 %v863, %v862
  %880 = vmatprep.subr.bf16.mxu0 0
  %881 = vmatpush1.bf16.msra.mxu0 %v864
  %882 = vmatprep.subr.bf16.mxu0 0
  %883 = vmatpush1.bf16.msra.mxu0 %v865
  %884 = vmatprep.subr.bf16.mxu0 0
  %885 = vmatpush1.bf16.msra.mxu0 %v866
  %886 = vmatprep.subr.bf16.mxu0 0
  %887 = vmatpush1.bf16.msra.mxu0 %v867
  %888 = vmatprep.subr.bf16.mxu0 0
  %889 = vmatpush1.bf16.msra.mxu0 %v868
  %890 = vmatprep.subr.bf16.mxu0 0
  %891 = vmatpush1.bf16.msra.mxu0 %v869
  %892 = vmatprep.subr.bf16.mxu0 0
  %893 = vmatpush1.bf16.msra.mxu0 %v870
  %894 = vmatprep.subr.bf16.mxu0 0
  %895 = vmatpush1.bf16.msra.mxu0 %v871
  %896 = vmatprep.subr.bf16.mxu0 0
  %897 = vmatpush1.bf16.msra.mxu0 0
  %898 = vmatprep.subr.bf16.mxu0 0
  %899 = vmatpush1.bf16.msra.mxu0 0
  %900 = vmatprep.subr.bf16.mxu0 0
  %901 = vmatpush1.bf16.msra.mxu0 0
  %902 = vmatprep.subr.bf16.mxu0 0
  %903 = vmatpush1.bf16.msra.mxu0 0
  %904 = vmatprep.subr.bf16.mxu0 0
  %905 = vmatpush1.bf16.msra.mxu0 0
  %906 = vmatprep.subr.bf16.mxu0 0
  %907 = vmatpush1.bf16.msra.mxu0 0
  %908 = vmatprep.subr.bf16.mxu0 0
  %909 = vmatpush1.bf16.msra.mxu0 0
  %910 = vmatprep.subr.bf16.mxu0 0
  %911 = vmatpush1.bf16.msra.mxu0 0
  %912 = vmatprep.mubr.bf16.mxu0 0
  %913 = vmatmul.mubr.bf16.gmra.mrb[0].mxu0 %v800
  %v914 = vpop.f32.mrb[0].mxu0
  %v915 = vadd.f32 0.0, %v914
  %v916 = vpop.f32.mrb[0].mxu0
  %v917 = vpop.f32.mrb[0].mxu0
  %v918 = vadd.f32 0.0, %v917
  %v919 = vpop.f32.mrb[0].mxu0
  %920 = vmatprep.mubr.bf16.mxu0 0
  %921 = vmatmul.mubr.bf16.gmra.mrb[0].mxu0 %v801
  %v922 = vpop.f32.mrb[0].mxu0
  %v923 = vadd.f32 0.0, %v922
  %v924 = vpop.f32.mrb[0].mxu0
  %v925 = vpop.f32.mrb[0].mxu0
  %v926 = vadd.f32 0.0, %v925
  %v927 = vpop.f32.mrb[0].mxu0
  %928 = vmatprep.mubr.bf16.mxu0 0
  %929 = vmatmul.mubr.bf16.gmra.mrb[0].mxu0 %v802
  %v930 = vpop.f32.mrb[0].mxu0
  %v931 = vadd.f32 0.0, %v930
  %v932 = vpop.f32.mrb[0].mxu0
  %v933 = vpop.f32.mrb[0].mxu0
  %v934 = vadd.f32 0.0, %v933
  %v935 = vpop.f32.mrb[0].mxu0
  %936 = vmatprep.mubr.bf16.mxu0 0
  %937 = vmatmul.mubr.bf16.gmra.mrb[0].mxu0 %v803
  %v938 = vpop.f32.mrb[0].mxu0
  %v939 = vadd.f32 0.0, %v938
  %v940 = vpop.f32.mrb[0].mxu0
  %v941 = vpop.f32.mrb[0].mxu0
  %v942 = vadd.f32 0.0, %v941
  %v943 = vpop.f32.mrb[0].mxu0
  %944 = vmatprep.mubr.bf16.mxu0 0
  %945 = vmatmul.mubr.bf16.gmra.mrb[0].mxu0 %v804
  %v946 = vpop.f32.mrb[0].mxu0
  %v947 = vadd.f32 0.0, %v946
  %v948 = vpop.f32.mrb[0].mxu0
  %v949 = vpop.f32.mrb[0].mxu0
  %v950 = vadd.f32 0.0, %v949
  %v951 = vpop.f32.mrb[0].mxu0
  %952 = vmatprep.mubr.bf16.mxu0 0
  %953 = vmatmul.mubr.bf16.gmra.mrb[0].mxu0 %v805
  %v954 = vpop.f32.mrb[0].mxu0
  %v955 = vadd.f32 0.0, %v954
  %v956 = vpop.f32.mrb[0].mxu0
  %v957 = vpop.f32.mrb[0].mxu0
  %v958 = vadd.f32 0.0, %v957
  %v959 = vpop.f32.mrb[0].mxu0
  %960 = vmatprep.mubr.bf16.mxu0 0
  %961 = vmatmul.mubr.bf16.gmra.mrb[0].mxu0 %v806
  %v962 = vpop.f32.mrb[0].mxu0
  %v963 = vadd.f32 0.0, %v962
  %v964 = vpop.f32.mrb[0].mxu0
  %v965 = vpop.f32.mrb[0].mxu0
  %v966 = vadd.f32 0.0, %v965
  %v967 = vpop.f32.mrb[0].mxu0
  %968 = vmatprep.mubr.bf16.mxu0 0
  %969 = vmatmul.mubr.bf16.gmra.mrb[0].mxu0 %v807
  %v970 = vpop.f32.mrb[0].mxu0
  %v971 = vadd.f32 0.0, %v970
  %v972 = vpop.f32.mrb[0].mxu0
  %v973 = vpop.f32.mrb[0].mxu0
  %v974 = vadd.f32 0.0, %v973
  %v975 = vpop.f32.mrb[0].mxu0
  %976 = vmatprep.mubr.bf16.mxu0 0
  %977 = vmatmul.mubr.bf16.gmra.mrb[0].mxu0 %v808
  %v978 = vpop.f32.mrb[0].mxu0
  %v979 = vadd.f32 0.0, %v978
  %v980 = vpop.f32.mrb[0].mxu0
  %v981 = vpop.f32.mrb[0].mxu0
  %v982 = vadd.f32 0.0, %v981
  %v983 = vpop.f32.mrb[0].mxu0
  %984 = vmatprep.mubr.bf16.mxu0 0
  %985 = vmatmul.mubr.bf16.gmra.mrb[0].mxu0 %v809
  %v986 = vpop.f32.mrb[0].mxu0
  %v987 = vadd.f32 0.0, %v986
  %v988 = vpop.f32.mrb[0].mxu0
  %v989 = vpop.f32.mrb[0].mxu0
  %v990 = vadd.f32 0.0, %v989
  %v991 = vpop.f32.mrb[0].mxu0
  %992 = vmatprep.mubr.bf16.mxu0 0
  %993 = vmatmul.mubr.bf16.gmra.mrb[0].mxu0 %v810
  %v994 = vpop.f32.mrb[0].mxu0
  %v995 = vadd.f32 0.0, %v994
  %v996 = vpop.f32.mrb[0].mxu0
  %v997 = vpop.f32.mrb[0].mxu0
  %v998 = vadd.f32 0.0, %v997
  %v999 = vpop.f32.mrb[0].mxu0
  %1000 = vmatprep.mubr.bf16.mxu0 0
  %1001 = vmatmul.mubr.bf16.gmra.mrb[0].mxu0 %v811
  %v1002 = vpop.f32.mrb[0].mxu0
  %v1003 = vadd.f32 0.0, %v1002
  %v1004 = vpop.f32.mrb[0].mxu0
  %v1005 = vpop.f32.mrb[0].mxu0
  %v1006 = vadd.f32 0.0, %v1005
  %v1007 = vpop.f32.mrb[0].mxu0
  %1008 = vmatprep.mubr.bf16.mxu0 0
  %1009 = vmatmul.mubr.bf16.gmra.mrb[0].mxu0 %v812
  %v1010 = vpop.f32.mrb[0].mxu0
  %v1011 = vadd.f32 0.0, %v1010
  %v1012 = vpop.f32.mrb[0].mxu0
  %v1013 = vpop.f32.mrb[0].mxu0
  %v1014 = vadd.f32 0.0, %v1013
  %v1015 = vpop.f32.mrb[0].mxu0
  %1016 = vmatprep.mubr.bf16.mxu0 0
  %1017 = vmatmul.mubr.bf16.gmra.mrb[0].mxu0 %v813
  %v1018 = vpop.f32.mrb[0].mxu0
  %v1019 = vadd.f32 0.0, %v1018
  %v1020 = vpop.f32.mrb[0].mxu0
  %v1021 = vpop.f32.mrb[0].mxu0
  %v1022 = vadd.f32 0.0, %v1021
  %v1023 = vpop.f32.mrb[0].mxu0
  %1024 = vmatprep.mubr.bf16.mxu0 0
  %1025 = vmatmul.mubr.bf16.gmra.mrb[0].mxu0 %v814
  %v1026 = vpop.f32.mrb[0].mxu0
  %v1027 = vadd.f32 0.0, %v1026
  %v1028 = vpop.f32.mrb[0].mxu0
  %v1029 = vpop.f32.mrb[0].mxu0
  %v1030 = vadd.f32 0.0, %v1029
  %v1031 = vpop.f32.mrb[0].mxu0
  %1032 = vmatprep.mubr.bf16.mxu0 0
  %1033 = vmatmul.mubr.bf16.gmra.mrb[0].mxu0 %v815
  %v1034 = vpop.f32.mrb[0].mxu0
  %v1035 = vadd.f32 0.0, %v1034
  %v1036 = vpop.f32.mrb[0].mxu0
  %v1037 = vpop.f32.mrb[0].mxu0
  %v1038 = vadd.f32 0.0, %v1037
  %v1039 = vpop.f32.mrb[0].mxu0
  %1040 = vdwg.mxu0
  %v1041 = vpack.c.bf16 %v918, %v915
  %v1042 = vpack.c.bf16 %v926, %v923
  %v1043 = vpack.c.bf16 %v934, %v931
  %v1044 = vpack.c.bf16 %v942, %v939
  %v1045 = vpack.c.bf16 %v950, %v947
  %v1046 = vpack.c.bf16 %v958, %v955
  %v1047 = vpack.c.bf16 %v966, %v963
  %v1048 = vpack.c.bf16 %v974, %v971
  %v1049 = vpack.c.bf16 %v982, %v979
  %v1050 = vpack.c.bf16 %v990, %v987
  %v1051 = vpack.c.bf16 %v998, %v995
  %v1052 = vpack.c.bf16 %v1006, %v1003
  %v1053 = vpack.c.bf16 %v1014, %v1011
  %v1054 = vpack.c.bf16 %v1022, %v1019
  %v1055 = vpack.c.bf16 %v1030, %v1027
  %v1056 = vpack.c.bf16 %v1038, %v1035
  %v1057 = vld [vmem:[%s5] sm:$0x1]
  %v1059 = vlaneseq
  %v1060 = vshrl.u32 %v1059, 7
  %v1061 = vsub.s32 0, %v1060
  %v1062 = vrot.slane %v1057, %v1061
  %1064 = vmatprep.subr.bf16.mxu0 0
  %1065 = vmatpush1.bf16.msra.mxu0 %v1041
  %1066 = vmatprep.subr.bf16.mxu0 0
  %1067 = vmatpush1.bf16.msra.mxu0 %v1042
  %1068 = vmatprep.subr.bf16.mxu0 0
  %1069 = vmatpush1.bf16.msra.mxu0 %v1043
  %1070 = vmatprep.subr.bf16.mxu0 0
  %1071 = vmatpush1.bf16.msra.mxu0 %v1044
  %1072 = vmatprep.subr.bf16.mxu0 0
  %1073 = vmatpush1.bf16.msra.mxu0 %v1045
  %1074 = vmatprep.subr.bf16.mxu0 0
  %1075 = vmatpush1.bf16.msra.mxu0 %v1046
  %1076 = vmatprep.subr.bf16.mxu0 0
  %1077 = vmatpush1.bf16.msra.mxu0 %v1047
  %1078 = vmatprep.subr.bf16.mxu0 0
  %1079 = vmatpush1.bf16.msra.mxu0 %v1048
  %1080 = vmatprep.subr.bf16.mxu0 0
  %1081 = vmatpush1.bf16.msra.mxu0 %v1049
  %1082 = vmatprep.subr.bf16.mxu0 0
  %1083 = vmatpush1.bf16.msra.mxu0 %v1050
  %1084 = vmatprep.subr.bf16.mxu0 0
  %1085 = vmatpush1.bf16.msra.mxu0 %v1051
  %1086 = vmatprep.subr.bf16.mxu0 0
  %1087 = vmatpush1.bf16.msra.mxu0 %v1052
  %1088 = vmatprep.subr.bf16.mxu0 0
  %1089 = vmatpush1.bf16.msra.mxu0 %v1053
  %1090 = vmatprep.subr.bf16.mxu0 0
  %1091 = vmatpush1.bf16.msra.mxu0 %v1054
  %1092 = vmatprep.subr.bf16.mxu0 0
  %1093 = vmatpush1.bf16.msra.mxu0 %v1055
  %1094 = vmatprep.subr.bf16.mxu0 0
  %1095 = vmatpush1.bf16.msra.mxu0 %v1056
  %1096 = vmatprep.mubr.bf16.mxu0 %v544
  %1097 = vmatmul.mubr.bf16.gmra.mrb[0].mxu0 %v543
  %v1098 = vpop.f32.mrb[0].mxu0
  %v1099 = vadd.f32 %v1062, %v1098
  %v1100 = vpop.f32.mrb[0].mxu0
  %v1101 = vpop.f32.mrb[0].mxu0
  %v1102 = vadd.f32 %v1062, %v1101
  %v1103 = vpop.f32.mrb[0].mxu0
  %1104 = vmatprep.mubr.bf16.mxu0 %v546
  %1105 = vmatmul.mubr.bf16.gmra.mrb[0].mxu0 %v545
  %v1106 = vpop.f32.mrb[0].mxu0
  %v1107 = vadd.f32 %v1062, %v1106
  %v1108 = vpop.f32.mrb[0].mxu0
  %v1109 = vpop.f32.mrb[0].mxu0
  %v1110 = vadd.f32 %v1062, %v1109
  %v1111 = vpop.f32.mrb[0].mxu0
  %1112 = vmatprep.mubr.bf16.mxu0 %v548
  %1113 = vmatmul.mubr.bf16.gmra.mrb[0].mxu0 %v547
  %v1114 = vpop.f32.mrb[0].mxu0
  %v1115 = vadd.f32 %v1062, %v1114
  %v1116 = vpop.f32.mrb[0].mxu0
  %v1117 = vpop.f32.mrb[0].mxu0
  %v1118 = vadd.f32 %v1062, %v1117
  %v1119 = vpop.f32.mrb[0].mxu0
  %1120 = vmatprep.mubr.bf16.mxu0 %v550
  %1121 = vmatmul.mubr.bf16.gmra.mrb[0].mxu0 %v549
  %v1122 = vpop.f32.mrb[0].mxu0
  %v1123 = vadd.f32 %v1062, %v1122
  %v1124 = vpop.f32.mrb[0].mxu0
  %v1125 = vpop.f32.mrb[0].mxu0
  %v1126 = vadd.f32 %v1062, %v1125
  %v1127 = vpop.f32.mrb[0].mxu0
  %1128 = vmatprep.mubr.bf16.mxu0 %v552
  %1129 = vmatmul.mubr.bf16.gmra.mrb[0].mxu0 %v551
  %v1130 = vpop.f32.mrb[0].mxu0
  %v1131 = vadd.f32 %v1062, %v1130
  %v1132 = vpop.f32.mrb[0].mxu0
  %v1133 = vpop.f32.mrb[0].mxu0
  %v1134 = vadd.f32 %v1062, %v1133
  %v1135 = vpop.f32.mrb[0].mxu0
  %1136 = vmatprep.mubr.bf16.mxu0 %v554
  %1137 = vmatmul.mubr.bf16.gmra.mrb[0].mxu0 %v553
  %v1138 = vpop.f32.mrb[0].mxu0
  %v1139 = vadd.f32 %v1062, %v1138
  %v1140 = vpop.f32.mrb[0].mxu0
  %v1141 = vpop.f32.mrb[0].mxu0
  %v1142 = vadd.f32 %v1062, %v1141
  %v1143 = vpop.f32.mrb[0].mxu0
  %1144 = vmatprep.mubr.bf16.mxu0 %v556
  %1145 = vmatmul.mubr.bf16.gmra.mrb[0].mxu0 %v555
  %v1146 = vpop.f32.mrb[0].mxu0
  %v1147 = vadd.f32 %v1062, %v1146
  %v1148 = vpop.f32.mrb[0].mxu0
  %v1149 = vpop.f32.mrb[0].mxu0
  %v1150 = vadd.f32 %v1062, %v1149
  %v1151 = vpop.f32.mrb[0].mxu0
  %1152 = vmatprep.mubr.bf16.mxu0 %v558
  %1153 = vmatmul.mubr.bf16.gmra.mrb[0].mxu0 %v557
  %v1154 = vpop.f32.mrb[0].mxu0
  %v1155 = vadd.f32 %v1062, %v1154
  %v1156 = vpop.f32.mrb[0].mxu0
  %v1157 = vpop.f32.mrb[0].mxu0
  %v1158 = vadd.f32 %v1062, %v1157
  %v1159 = vpop.f32.mrb[0].mxu0
  %1160 = vmatprep.mubr.bf16.mxu0 %v560
  %1161 = vmatmul.mubr.bf16.gmra.mrb[0].mxu0 %v559
  %v1162 = vpop.f32.mrb[0].mxu0
  %v1163 = vadd.f32 %v1062, %v1162
  %v1164 = vpop.f32.mrb[0].mxu0
  %v1165 = vpop.f32.mrb[0].mxu0
  %v1166 = vadd.f32 %v1062, %v1165
  %v1167 = vpop.f32.mrb[0].mxu0
  %1168 = vmatprep.mubr.bf16.mxu0 %v562
  %1169 = vmatmul.mubr.bf16.gmra.mrb[0].mxu0 %v561
  %v1170 = vpop.f32.mrb[0].mxu0
  %v1171 = vadd.f32 %v1062, %v1170
  %v1172 = vpop.f32.mrb[0].mxu0
  %v1173 = vpop.f32.mrb[0].mxu0
  %v1174 = vadd.f32 %v1062, %v1173
  %v1175 = vpop.f32.mrb[0].mxu0
  %1176 = vmatprep.mubr.bf16.mxu0 %v564
  %1177 = vmatmul.mubr.bf16.gmra.mrb[0].mxu0 %v563
  %v1178 = vpop.f32.mrb[0].mxu0
  %v1179 = vadd.f32 %v1062, %v1178
  %v1180 = vpop.f32.mrb[0].mxu0
  %v1181 = vpop.f32.mrb[0].mxu0
  %v1182 = vadd.f32 %v1062, %v1181
  %v1183 = vpop.f32.mrb[0].mxu0
  %1184 = vmatprep.mubr.bf16.mxu0 %v566
  %1185 = vmatmul.mubr.bf16.gmra.mrb[0].mxu0 %v565
  %v1186 = vpop.f32.mrb[0].mxu0
  %v1187 = vadd.f32 %v1062, %v1186
  %v1188 = vpop.f32.mrb[0].mxu0
  %v1189 = vpop.f32.mrb[0].mxu0
  %v1190 = vadd.f32 %v1062, %v1189
  %v1191 = vpop.f32.mrb[0].mxu0
  %1192 = vmatprep.mubr.bf16.mxu0 %v568
  %1193 = vmatmul.mubr.bf16.gmra.mrb[0].mxu0 %v567
  %v1194 = vpop.f32.mrb[0].mxu0
  %v1195 = vadd.f32 %v1062, %v1194
  %v1196 = vpop.f32.mrb[0].mxu0
  %v1197 = vpop.f32.mrb[0].mxu0
  %v1198 = vadd.f32 %v1062, %v1197
  %v1199 = vpop.f32.mrb[0].mxu0
  %1200 = vmatprep.mubr.bf16.mxu0 %v570
  %1201 = vmatmul.mubr.bf16.gmra.mrb[0].mxu0 %v569
  %v1202 = vpop.f32.mrb[0].mxu0
  %v1203 = vadd.f32 %v1062, %v1202
  %v1204 = vpop.f32.mrb[0].mxu0
  %v1205 = vpop.f32.mrb[0].mxu0
  %v1206 = vadd.f32 %v1062, %v1205
  %v1207 = vpop.f32.mrb[0].mxu0
  %1208 = vmatprep.mubr.bf16.mxu0 %v572
  %1209 = vmatmul.mubr.bf16.gmra.mrb[0].mxu0 %v571
  %v1210 = vpop.f32.mrb[0].mxu0
  %v1211 = vadd.f32 %v1062, %v1210
  %v1212 = vpop.f32.mrb[0].mxu0
  %v1213 = vpop.f32.mrb[0].mxu0
  %v1214 = vadd.f32 %v1062, %v1213
  %v1215 = vpop.f32.mrb[0].mxu0
  %1216 = vmatprep.mubr.bf16.mxu0 %v574
  %1217 = vmatmul.mubr.bf16.gmra.mrb[0].mxu0 %v573
  %v1218 = vpop.f32.mrb[0].mxu0
  %v1219 = vadd.f32 %v1062, %v1218
  %v1220 = vpop.f32.mrb[0].mxu0
  %v1221 = vpop.f32.mrb[0].mxu0
  %v1222 = vadd.f32 %v1062, %v1221
  %v1223 = vpop.f32.mrb[0].mxu0
  %1224 = vdwg.mxu0
  %v1225 = vmax.f32 %v1099, 0.0
  %v1226 = vmax.f32 %v1102, 0.0
  %v1227 = vmax.f32 %v1107, 0.0
  %v1228 = vmax.f32 %v1110, 0.0
  %v1229 = vmax.f32 %v1115, 0.0
  %v1230 = vmax.f32 %v1118, 0.0
  %v1231 = vmax.f32 %v1123, 0.0
  %v1232 = vmax.f32 %v1126, 0.0
  %v1233 = vmax.f32 %v1131, 0.0
  %v1234 = vmax.f32 %v1134, 0.0
  %v1235 = vmax.f32 %v1139, 0.0
  %v1236 = vmax.f32 %v1142, 0.0
  %v1237 = vmax.f32 %v1147, 0.0
  %v1238 = vmax.f32 %v1150, 0.0
  %v1239 = vmax.f32 %v1155, 0.0
  %v1240 = vmax.f32 %v1158, 0.0
  %v1241 = vmax.f32 %v1163, 0.0
  %v1242 = vmax.f32 %v1166, 0.0
  %v1243 = vmax.f32 %v1171, 0.0
  %v1244 = vmax.f32 %v1174, 0.0
  %v1245 = vmax.f32 %v1179, 0.0
  %v1246 = vmax.f32 %v1182, 0.0
  %v1247 = vmax.f32 %v1187, 0.0
  %v1248 = vmax.f32 %v1190, 0.0
  %v1249 = vmax.f32 %v1195, 0.0
  %v1250 = vmax.f32 %v1198, 0.0
  %v1251 = vmax.f32 %v1203, 0.0
  %v1252 = vmax.f32 %v1206, 0.0
  %v1253 = vmax.f32 %v1211, 0.0
  %v1254 = vmax.f32 %v1214, 0.0
  %v1255 = vmax.f32 %v1219, 0.0
  %v1256 = vmax.f32 %v1222, 0.0
  %v1257 = vpack.c.bf16 %v1226, %v1225
  %v1258 = vpack.c.bf16 %v1228, %v1227
  %v1259 = vpack.c.bf16 %v1230, %v1229
  %v1260 = vpack.c.bf16 %v1232, %v1231
  %v1261 = vpack.c.bf16 %v1234, %v1233
  %v1262 = vpack.c.bf16 %v1236, %v1235
  %v1263 = vpack.c.bf16 %v1238, %v1237
  %v1264 = vpack.c.bf16 %v1240, %v1239
  %v1265 = vpack.c.bf16 %v1242, %v1241
  %v1266 = vpack.c.bf16 %v1244, %v1243
  %v1267 = vpack.c.bf16 %v1246, %v1245
  %v1268 = vpack.c.bf16 %v1248, %v1247
  %v1269 = vpack.c.bf16 %v1250, %v1249
  %v1270 = vpack.c.bf16 %v1252, %v1251
  %v1271 = vpack.c.bf16 %v1254, %v1253
  %v1272 = vpack.c.bf16 %v1256, %v1255
  %v1273 = vld [vmem:[%s6] sm:$0xff]
  %v1275 = vunpack.c.l.b16 %v1273
  %v1276 = vunpack.c.h.b16 %v1273
  %v1277 = vpack.c.b16 %v1275, %v1275
  %v1278 = vpack.c.b16 %v1276, %v1276
  %1281 = vmatprep.subr.bf16.mxu0 0
  %1282 = vmatpush1.bf16.msra.mxu0 %v1257
  %1283 = vmatprep.subr.bf16.mxu0 0
  %1284 = vmatpush1.bf16.msra.mxu0 %v1258
  %1285 = vmatprep.subr.bf16.mxu0 0
  %1286 = vmatpush1.bf16.msra.mxu0 %v1259
  %1287 = vmatprep.subr.bf16.mxu0 0
  %1288 = vmatpush1.bf16.msra.mxu0 %v1260
  %1289 = vmatprep.subr.bf16.mxu0 0
  %1290 = vmatpush1.bf16.msra.mxu0 %v1261
  %1291 = vmatprep.subr.bf16.mxu0 0
  %1292 = vmatpush1.bf16.msra.mxu0 %v1262
  %1293 = vmatprep.subr.bf16.mxu0 0
  %1294 = vmatpush1.bf16.msra.mxu0 %v1263
  %1295 = vmatprep.subr.bf16.mxu0 0
  %1296 = vmatpush1.bf16.msra.mxu0 %v1264
  %1297 = vmatprep.subr.bf16.mxu0 0
  %1298 = vmatpush1.bf16.msra.mxu0 %v1265
  %1299 = vmatprep.subr.bf16.mxu0 0
  %1300 = vmatpush1.bf16.msra.mxu0 %v1266
  %1301 = vmatprep.subr.bf16.mxu0 0
  %1302 = vmatpush1.bf16.msra.mxu0 %v1267
  %1303 = vmatprep.subr.bf16.mxu0 0
  %1304 = vmatpush1.bf16.msra.mxu0 %v1268
  %1305 = vmatprep.subr.bf16.mxu0 0
  %1306 = vmatpush1.bf16.msra.mxu0 %v1269
  %1307 = vmatprep.subr.bf16.mxu0 0
  %1308 = vmatpush1.bf16.msra.mxu0 %v1270
  %1309 = vmatprep.subr.bf16.mxu0 0
  %1310 = vmatpush1.bf16.msra.mxu0 %v1271
  %1311 = vmatprep.subr.bf16.mxu0 0
  %1312 = vmatpush1.bf16.msra.mxu0 %v1272
  %1313 = vmatprep.mubr.bf16.mxu0 %v1278
  %1314 = vmatmul.mubr.bf16.gmra.mrb[0].mxu0 %v1277
  %v1315 = vpop.f32.mrb[0].mxu0
  %v1316 = vadd.f32 0.0, %v1315
  %v1317 = vpop.f32.mrb[0].mxu0
  %v1318 = vpop.f32.mrb[0].mxu0
  %v1319 = vpop.f32.mrb[0].mxu0
  %1320 = vdwg.mxu0
  %v1321 = vpack.c.bf16 %v1316, %v1316
  %v1322 = vld [vmem:[%s7] sm:$0xf]
  %v1323 = vld [vmem:[%s7 + $0x4] sm:$0xf]
  %v1324 = vld [vmem:[%s7 + $0x8] sm:$0xf]
  %v1325 = vld [vmem:[%s7 + $0xc] sm:$0xf]
  %v1326 = vld [vmem:[%s7 + $0x10] sm:$0xf]
  %v1327 = vld [vmem:[%s7 + $0x14] sm:$0xf]
  %v1328 = vld [vmem:[%s7 + $0x18] sm:$0xf]
  %v1329 = vld [vmem:[%s7 + $0x1c] sm:$0xf]
  %v1330 = vld [vmem:[%s7 + $0x20] sm:$0xf]
  %v1331 = vld [vmem:[%s7 + $0x24] sm:$0xf]
  %v1332 = vld [vmem:[%s7 + $0x28] sm:$0xf]
  %v1333 = vld [vmem:[%s7 + $0x2c] sm:$0xf]
  %v1334 = vld [vmem:[%s7 + $0x30] sm:$0xf]
  %v1335 = vld [vmem:[%s7 + $0x34] sm:$0xf]
  %v1336 = vld [vmem:[%s7 + $0x38] sm:$0xf]
  %v1337 = vld [vmem:[%s7 + $0x3c] sm:$0xf]
  %v1338 = vld [vmem:[%s8] sm:$0x1]
  %v1340 = vlaneseq
  %v1341 = vshrl.u32 %v1340, 7
  %v1342 = vsub.s32 0, %v1341
  %v1343 = vrot.slane %v1338, %v1342
  %v1361 = vunpack.c.l.b16 %v1322
  %v1362 = vunpack.c.l.b16 %v1323
  %v1363 = vunpack.c.l.b16 %v1324
  %v1364 = vunpack.c.l.b16 %v1325
  %v1365 = vunpack.c.l.b16 %v1326
  %v1366 = vunpack.c.l.b16 %v1327
  %v1367 = vunpack.c.l.b16 %v1328
  %v1368 = vunpack.c.l.b16 %v1329
  %v1369 = vunpack.c.l.b16 %v1330
  %v1370 = vunpack.c.l.b16 %v1331
  %v1371 = vunpack.c.l.b16 %v1332
  %v1372 = vunpack.c.l.b16 %v1333
  %v1373 = vunpack.c.l.b16 %v1334
  %v1374 = vunpack.c.l.b16 %v1335
  %v1375 = vunpack.c.l.b16 %v1336
  %v1376 = vunpack.c.l.b16 %v1337
  %v1377 = vpack.c.b16 %v1362, %v1361
  %v1378 = vpack.c.b16 %v1364, %v1363
  %v1379 = vpack.c.b16 %v1366, %v1365
  %v1380 = vpack.c.b16 %v1368, %v1367
  %v1381 = vpack.c.b16 %v1370, %v1369
  %v1382 = vpack.c.b16 %v1372, %v1371
  %v1383 = vpack.c.b16 %v1374, %v1373
  %v1384 = vpack.c.b16 %v1376, %v1375
  %1393 = vmatprep.subr.bf16.mxu0 0
  %1394 = vmatpush1.bf16.msra.mxu0 %v1377
  %1395 = vmatprep.subr.bf16.mxu0 0
  %1396 = vmatpush1.bf16.msra.mxu0 %v1378
  %1397 = vmatprep.subr.bf16.mxu0 0
  %1398 = vmatpush1.bf16.msra.mxu0 %v1379
  %1399 = vmatprep.subr.bf16.mxu0 0
  %1400 = vmatpush1.bf16.msra.mxu0 %v1380
  %1401 = vmatprep.subr.bf16.mxu0 0
  %1402 = vmatpush1.bf16.msra.mxu0 %v1381
  %1403 = vmatprep.subr.bf16.mxu0 0
  %1404 = vmatpush1.bf16.msra.mxu0 %v1382
  %1405 = vmatprep.subr.bf16.mxu0 0
  %1406 = vmatpush1.bf16.msra.mxu0 %v1383
  %1407 = vmatprep.subr.bf16.mxu0 0
  %1408 = vmatpush1.bf16.msra.mxu0 %v1384
  %1409 = vmatprep.subr.bf16.mxu0 0
  %1410 = vmatpush1.bf16.msra.mxu0 0
  %1411 = vmatprep.subr.bf16.mxu0 0
  %1412 = vmatpush1.bf16.msra.mxu0 0
  %1413 = vmatprep.subr.bf16.mxu0 0
  %1414 = vmatpush1.bf16.msra.mxu0 0
  %1415 = vmatprep.subr.bf16.mxu0 0
  %1416 = vmatpush1.bf16.msra.mxu0 0
  %1417 = vmatprep.subr.bf16.mxu0 0
  %1418 = vmatpush1.bf16.msra.mxu0 0
  %1419 = vmatprep.subr.bf16.mxu0 0
  %1420 = vmatpush1.bf16.msra.mxu0 0
  %1421 = vmatprep.subr.bf16.mxu0 0
  %1422 = vmatpush1.bf16.msra.mxu0 0
  %1423 = vmatprep.subr.bf16.mxu0 0
  %1424 = vmatpush1.bf16.msra.mxu0 0
  %1425 = vmatprep.mubr.bf16.mxu0 0
  %1426 = vmatmul.mubr.bf16.gmra.mrb[0].mxu0 %v1321
  %v1427 = vpop.f32.mrb[0].mxu0
  %v1428 = vadd.f32 %v1343, %v1427
  %v1429 = vpop.f32.mrb[0].mxu0
  %v1430 = vpop.f32.mrb[0].mxu0
  %v1431 = vpop.f32.mrb[0].mxu0
  %1432 = vdwg.mxu0
  %v1433 = vmax.f32 %v1428, 0.0
  %v1434 = vpack.c.bf16 %v1433, %v1433
  %v1435 = vld [vmem:[%s9] sm:$0xf]
  %v1436 = vld [vmem:[%s9 + $0x4] sm:$0xf]
  %v1437 = vld [vmem:[%s9 + $0x8] sm:$0xf]
  %v1438 = vld [vmem:[%s9 + $0xc] sm:$0xf]
  %v1439 = vld [vmem:[%s9 + $0x10] sm:$0xf]
  %v1440 = vld [vmem:[%s9 + $0x14] sm:$0xf]
  %v1441 = vld [vmem:[%s9 + $0x18] sm:$0xf]
  %v1442 = vld [vmem:[%s9 + $0x1c] sm:$0xf]
  %v1443 = vld [vmem:[%s9 + $0x20] sm:$0xf]
  %v1444 = vld [vmem:[%s9 + $0x24] sm:$0xf]
  %v1445 = vld [vmem:[%s9 + $0x28] sm:$0xf]
  %v1446 = vld [vmem:[%s9 + $0x2c] sm:$0xf]
  %v1447 = vld [vmem:[%s9 + $0x30] sm:$0xf]
  %v1448 = vld [vmem:[%s9 + $0x34] sm:$0xf]
  %v1449 = vld [vmem:[%s9 + $0x38] sm:$0xf]
  %v1450 = vld [vmem:[%s9 + $0x3c] sm:$0xf]
  %v1451 = vld [vmem:[%s10] sm:$0x1]
  %v1453 = vlaneseq
  %v1454 = vshrl.u32 %v1453, 7
  %v1455 = vsub.s32 0, %v1454
  %v1456 = vrot.slane %v1451, %v1455
  %v1474 = vunpack.c.l.b16 %v1435
  %v1475 = vunpack.c.l.b16 %v1436
  %v1476 = vunpack.c.l.b16 %v1437
  %v1477 = vunpack.c.l.b16 %v1438
  %v1478 = vunpack.c.l.b16 %v1439
  %v1479 = vunpack.c.l.b16 %v1440
  %v1480 = vunpack.c.l.b16 %v1441
  %v1481 = vunpack.c.l.b16 %v1442
  %v1482 = vunpack.c.l.b16 %v1443
  %v1483 = vunpack.c.l.b16 %v1444
  %v1484 = vunpack.c.l.b16 %v1445
  %v1485 = vunpack.c.l.b16 %v1446
  %v1486 = vunpack.c.l.b16 %v1447
  %v1487 = vunpack.c.l.b16 %v1448
  %v1488 = vunpack.c.l.b16 %v1449
  %v1489 = vunpack.c.l.b16 %v1450
  %v1490 = vpack.c.b16 %v1475, %v1474
  %v1491 = vpack.c.b16 %v1477, %v1476
  %v1492 = vpack.c.b16 %v1479, %v1478
  %v1493 = vpack.c.b16 %v1481, %v1480
  %v1494 = vpack.c.b16 %v1483, %v1482
  %v1495 = vpack.c.b16 %v1485, %v1484
  %v1496 = vpack.c.b16 %v1487, %v1486
  %v1497 = vpack.c.b16 %v1489, %v1488
  %1506 = vmatprep.subr.bf16.mxu0 0
  %1507 = vmatpush1.bf16.msra.mxu0 %v1490
  %1508 = vmatprep.subr.bf16.mxu0 0
  %1509 = vmatpush1.bf16.msra.mxu0 %v1491
  %1510 = vmatprep.subr.bf16.mxu0 0
  %1511 = vmatpush1.bf16.msra.mxu0 %v1492
  %1512 = vmatprep.subr.bf16.mxu0 0
  %1513 = vmatpush1.bf16.msra.mxu0 %v1493
  %1514 = vmatprep.subr.bf16.mxu0 0
  %1515 = vmatpush1.bf16.msra.mxu0 %v1494
  %1516 = vmatprep.subr.bf16.mxu0 0
  %1517 = vmatpush1.bf16.msra.mxu0 %v1495
  %1518 = vmatprep.subr.bf16.mxu0 0
  %1519 = vmatpush1.bf16.msra.mxu0 %v1496
  %1520 = vmatprep.subr.bf16.mxu0 0
  %1521 = vmatpush1.bf16.msra.mxu0 %v1497
  %1522 = vmatprep.subr.bf16.mxu0 0
  %1523 = vmatpush1.bf16.msra.mxu0 0
  %1524 = vmatprep.subr.bf16.mxu0 0
  %1525 = vmatpush1.bf16.msra.mxu0 0
  %1526 = vmatprep.subr.bf16.mxu0 0
  %1527 = vmatpush1.bf16.msra.mxu0 0
  %1528 = vmatprep.subr.bf16.mxu0 0
  %1529 = vmatpush1.bf16.msra.mxu0 0
  %1530 = vmatprep.subr.bf16.mxu0 0
  %1531 = vmatpush1.bf16.msra.mxu0 0
  %1532 = vmatprep.subr.bf16.mxu0 0
  %1533 = vmatpush1.bf16.msra.mxu0 0
  %1534 = vmatprep.subr.bf16.mxu0 0
  %1535 = vmatpush1.bf16.msra.mxu0 0
  %1536 = vmatprep.subr.bf16.mxu0 0
  %1537 = vmatpush1.bf16.msra.mxu0 0
  %1538 = vmatprep.mubr.bf16.mxu0 0
  %1539 = vmatmul.mubr.bf16.gmra.mrb[0].mxu0 %v1434
  %v1540 = vpop.f32.mrb[0].mxu0
  %v1541 = vadd.f32 %v1456, %v1540
  %v1542 = vpop.f32.mrb[0].mxu0
  %v1543 = vpop.f32.mrb[0].mxu0
  %v1544 = vpop.f32.mrb[0].mxu0
  %1545 = vdwg.mxu0
  %1546 = vst [vmem:[%s11] sm:$0xff] %v1541
  // Predicated region
  $region46: #{sealgnn_pallas.1} parent=0 // pred_check
    _
  $region47: #{sealgnn_pallas.1} parent=0 // pred_check_branch
    %1548 = sbr.rel (0) target = $region49
  $region48: #{sealgnn_pallas.1} parent=0 // pred_region
    _
  $region49: #{sealgnn_pallas.1} parent=0 // pred_fallthru
    _
  // Predicated region
  $region50: #{sealgnn_pallas.1} parent=0 // pred_check
    _
  $region51: #{sealgnn_pallas.1} parent=0 // pred_check_branch
    %1550 = sbr.rel (0) target = $region53
  $region52: #{sealgnn_pallas.1} parent=0 // pred_region
    _
  $region53: #{sealgnn_pallas.1} parent=0 // pred_fallthru
    _

</llo_original>
